<compile_context>
chip_gen: v5e
topology: v5e:2x2
jax: 0.10.0
libtpu: 0.0.40
codegen_flags: <defaults>
</compile_context>

<pallas_src>
import jax
import jax.numpy as jnp
from jax import lax
from jax.experimental import pallas as pl
from jax.experimental.pallas import tpu as pltpu

EPS = 1e-5  # torch.nn.BatchNorm1d default


def ncf_mlp_kernel(uids_ref, sids_ref,              # scalar-prefetch ids (SMEM)
                   uemb_hbm, semb_hbm,              # embedding tables (HBM, pl.ANY)
                   w1_ref, w2_ref, w3_ref, bn_ref,  # weights + packed BN params (VMEM)
                   o_ref,                           # output (VMEM)
                   u_buf, s_buf, u_sem, s_sem):     # scratch
    """Fused: row-DMA embedding gather + concat-free W1 + 3x (Linear->BN->ReLU)."""
    B = u_buf.shape[0]
    Du = u_buf.shape[1]
    H1 = w1_ref.shape[1]
    H2 = w2_ref.shape[1]
    H3 = w3_ref.shape[1]

    # --- Scalar-prefetch row gather: DMA only the B needed rows out of the
    # HBM-resident tables.  Start all 2*B row copies first, then wait, so the
    # copies overlap each other.
    for i in range(B):
        pltpu.make_async_copy(uemb_hbm.at[pl.ds(uids_ref[i], 1), :],
                              u_buf.at[pl.ds(i, 1), :], u_sem.at[i]).start()
        pltpu.make_async_copy(semb_hbm.at[pl.ds(sids_ref[i], 1), :],
                              s_buf.at[pl.ds(i, 1), :], s_sem.at[i]).start()
    for i in range(B):
        # Wait descriptors use a static source slice (only shape/bytes matter);
        # avoids re-reading SMEM after the DMA wait.
        pltpu.make_async_copy(uemb_hbm.at[pl.ds(0, 1), :],
                              u_buf.at[pl.ds(i, 1), :], u_sem.at[i]).wait()
        pltpu.make_async_copy(semb_hbm.at[pl.ds(0, 1), :],
                              s_buf.at[pl.ds(i, 1), :], s_sem.at[i]).wait()

    u = u_buf[...]   # (B, Du) f32, exact table rows
    s = s_buf[...]   # (B, Ds) f32

    def bn_relu(y, g, be):
        # Training-mode BatchNorm1d (batch mean, biased batch variance,
        # eps=1e-5).  Two-pass variance; gamma folded into one per-feature
        # scale, (beta - mean*scale) into one shift; fused ReLU.
        mean = jnp.mean(y, axis=0, keepdims=True)                 # (1, H)
        d = y - mean
        var = jnp.mean(d * d, axis=0, keepdims=True)              # (1, H)
        scale = g * lax.rsqrt(var + EPS)                          # (1, H)
        shift = be - mean * scale                                 # (1, H)
        return jnp.maximum(y * scale + shift, 0.0)                # (B, H)

    # Layer 1: concat([u, s], 1) @ W1 == u @ W1[:Du] + s @ W1[Du:]  (static
    # slices of the VMEM-resident W1 -> the concat never materializes).
    # Linear biases are dropped: training-mode BN mean subtraction cancels
    # them exactly.
    y1 = (jnp.dot(u.astype(jnp.bfloat16), w1_ref[:Du, :],
                  preferred_element_type=jnp.float32) +
          jnp.dot(s.astype(jnp.bfloat16), w1_ref[Du:, :],
                  preferred_element_type=jnp.float32))
    h = bn_relu(y1, bn_ref[0:1, :H1], bn_ref[1:2, :H1])

    y2 = jnp.dot(h.astype(jnp.bfloat16), w2_ref[...],
                 preferred_element_type=jnp.float32)
    h = bn_relu(y2, bn_ref[2:3, :H2], bn_ref[3:4, :H2])

    y3 = jnp.dot(h.astype(jnp.bfloat16), w3_ref[...],
                 preferred_element_type=jnp.float32)
    h = bn_relu(y3, bn_ref[4:5, :H3], bn_ref[5:6, :H3])

    o_ref[...] = h


def ncf_mlp_forward(users_ids, services_ids, user_emb, service_emb, params):
    """users_ids / services_ids: (B,) int32; user_emb/service_emb: (N+1, D) f32;
    params: list of (W, gamma, beta) per layer, W stored as (in, out)."""
    B = users_ids.shape[0]
    Du = user_emb.shape[1]
    Ds = service_emb.shape[1]
    (w1, g1, be1), (w2, g2, be2), (w3, g3, be3) = params
    H1, H2, H3 = w1.shape[1], w2.shape[1], w3.shape[1]
    Hmax = max(H1, H2, H3)

    def row(v):
        v = v.astype(jnp.float32).reshape(1, -1)
        return jnp.pad(v, ((0, 0), (0, Hmax - v.shape[1])))

    # All six gamma/beta vectors packed into one (6, Hmax) input: one DMA
    # instead of six sub-KB DMAs.
    bn = jnp.concatenate([row(g1), row(be1), row(g2), row(be2),
                          row(g3), row(be3)], axis=0)

    vmem = pltpu.MemorySpace.VMEM
    grid_spec = pltpu.PrefetchScalarGridSpec(
        num_scalar_prefetch=2,               # users_ids, services_ids -> SMEM
        grid=(1,),
        in_specs=[
            pl.BlockSpec(memory_space=pl.ANY),   # user_emb stays in HBM
            pl.BlockSpec(memory_space=pl.ANY),   # service_emb stays in HBM
            pl.BlockSpec(memory_space=vmem),     # w1 (Du+Ds, H1) bf16
            pl.BlockSpec(memory_space=vmem),     # w2 (H1, H2)   bf16
            pl.BlockSpec(memory_space=vmem),     # w3 (H2, H3)   bf16
            pl.BlockSpec(memory_space=vmem),     # packed BN gammas/betas f32
        ],
        out_specs=pl.BlockSpec(memory_space=vmem),
        scratch_shapes=[
            pltpu.VMEM((B, Du), jnp.float32),    # gathered user rows
            pltpu.VMEM((B, Ds), jnp.float32),    # gathered service rows
            pltpu.SemaphoreType.DMA((B,)),       # per-row DMA sems (user)
            pltpu.SemaphoreType.DMA((B,)),       # per-row DMA sems (service)
        ],
    )

    return pl.pallas_call(
        ncf_mlp_kernel,
        out_shape=jax.ShapeDtypeStruct((B, H3), jnp.float32),
        grid_spec=grid_spec,
        # Per-call VMEM footprint is a few KB (weights + scratch); tables stay
        # in HBM, so 32 MiB scoped limit is safe on v5e/v6e/v7x alike.
        compiler_params=pltpu.CompilerParams(
            dimension_semantics=("arbitrary",),
            vmem_limit_bytes=32 * 1024 * 1024),
    )(users_ids.astype(jnp.int32), services_ids.astype(jnp.int32),
      user_emb.astype(jnp.float32), service_emb.astype(jnp.float32),
      w1.astype(jnp.bfloat16), w2.astype(jnp.bfloat16), w3.astype(jnp.bfloat16),
      bn)


if __name__ == "__main__":
    key = jax.random.PRNGKey(0)
    keys = jax.random.split(key, 16)

    # Module hyper-parameters (small, consistent with the torch __init__).
    users_max_id = 100
    services_max_id = 50
    user_ids_embedding_dim = 16
    service_ids_embedding_dim = 16
    layers_spec = (64, 32, 16)   # output_dim = False -> no final projection
    batch = 8

    user_emb = 0.1 * jax.random.normal(
        keys[0], (users_max_id + 1, user_ids_embedding_dim), jnp.float32)
    service_emb = 0.1 * jax.random.normal(
        keys[1], (services_max_id + 1, service_ids_embedding_dim), jnp.float32)

    input_dim = user_ids_embedding_dim + service_ids_embedding_dim
    dims = [input_dim] + list(layers_spec)
    params = []
    k = 2
    for i in range(len(layers_spec)):
        fan_in, fan_out = dims[i], dims[i + 1]
        w = jax.random.normal(keys[k], (fan_in, fan_out), jnp.float32) / jnp.sqrt(fan_in); k += 1
        gamma = 1.0 + 0.05 * jax.random.normal(keys[k], (fan_out,), jnp.float32); k += 1
        beta = 0.05 * jax.random.normal(keys[k], (fan_out,), jnp.float32); k += 1
        # Note: Linear bias is intentionally not generated/passed — it is
        # exactly cancelled by training-mode BatchNorm's mean subtraction.
        params.append((w, gamma, beta))

    users_ids = jax.random.randint(
        keys[14], (batch,), 0, users_max_id + 1, dtype=jnp.int32)
    services_ids = jax.random.randint(
        keys[15], (batch,), 0, services_max_id + 1, dtype=jnp.int32)

    out = ncf_mlp_forward(users_ids, services_ids, user_emb, service_emb, params)
    out = jax.block_until_ready(out)
    assert out.shape == (batch, layers_spec[-1])

    # Pure-JAX reference of the intended math (exact f32 gather + concat, bf16
    # matmul operands with f32 accumulation, training-mode BN, ReLU).
    def reference(uids, sids):
        u = jnp.take(user_emb, uids, axis=0)
        s = jnp.take(service_emb, sids, axis=0)
        h = jnp.concatenate([u, s], axis=1)
        for (w, g, be) in params:
            y = jnp.dot(h.astype(jnp.bfloat16), w.astype(jnp.bfloat16),
                        preferred_element_type=jnp.float32)
            mean = jnp.mean(y, axis=0, keepdims=True)
            var = jnp.mean((y - mean) ** 2, axis=0, keepdims=True)
            y = (y - mean) * lax.rsqrt(var + EPS) * g.reshape(1, -1) + be.reshape(1, -1)
            h = jnp.maximum(y, 0.0)
        return h

    ref = jax.block_until_ready(reference(users_ids, services_ids))
    max_err = float(jnp.max(jnp.abs(out - ref)))
    assert max_err < 5e-2, f"max abs error {max_err}"
    print("KERNEL_OK")
</pallas_src>

<mosaic_0001>
module attributes {stable_mosaic.version = 11 : i64} {
  func.func @ncf_mlp_kernel(%arg0: i32, %arg1: memref<8xi32, #tpu.memory_space<smem>>, %arg2: memref<8xi32, #tpu.memory_space<smem>>, %arg3: memref<101x16xf32, #tpu.memory_space<any>>, %arg4: memref<51x16xf32, #tpu.memory_space<any>>, %arg5: memref<32x64xbf16, #tpu.memory_space<vmem>>, %arg6: memref<64x32xbf16, #tpu.memory_space<vmem>>, %arg7: memref<32x16xbf16, #tpu.memory_space<vmem>>, %arg8: memref<6x64xf32, #tpu.memory_space<vmem>>, %arg9: memref<8x16xf32, #tpu.memory_space<vmem>>, %arg10: memref<8x16xf32, #tpu.memory_space<vmem>>, %arg11: memref<8x16xf32, #tpu.memory_space<vmem>>, %arg12: memref<8x!tpu.dma_semaphore, #tpu.memory_space<semaphore_mem>>, %arg13: memref<8x!tpu.dma_semaphore, #tpu.memory_space<semaphore_mem>>) attributes {dimension_semantics = [#tpu.dimension_semantics<arbitrary>], iteration_bounds = array<i64: 1>, scalar_prefetch = 2 : i64, scratch_operands = 4 : i64, tpu.core_type = #tpu.core_type<tc>, window_params = [{}, {}, {pipeline_mode = #tpu.pipeline_mode<synchronous>, transform_indices = @transform_2, window_bounds = array<i64: 32, 64>}, {pipeline_mode = #tpu.pipeline_mode<synchronous>, transform_indices = @transform_3, window_bounds = array<i64: 64, 32>}, {pipeline_mode = #tpu.pipeline_mode<synchronous>, transform_indices = @transform_4, window_bounds = array<i64: 32, 16>}, {pipeline_mode = #tpu.pipeline_mode<synchronous>, transform_indices = @transform_5, window_bounds = array<i64: 6, 64>}, {pipeline_mode = #tpu.pipeline_mode<synchronous>, transform_indices = @transform_6, window_bounds = array<i64: 8, 16>}]} {
    %c0 = arith.constant 0 : index
    %0 = memref.load %arg1[%c0] : memref<8xi32, #tpu.memory_space<smem>>
    %c0_i32 = arith.constant 0 : i32
    %c0_i32_0 = arith.constant 0 : i32
    %1 = tpu.memref_slice %arg3[%0, %c0_i32_0] : memref<101x16xf32, #tpu.memory_space<any>> -> memref<1x16xf32, #tpu.memory_space<any>>
    %c0_i32_1 = arith.constant 0 : i32
    %c0_i32_2 = arith.constant 0 : i32
    %2 = tpu.memref_slice %arg10[%c0_i32_1, %c0_i32_2] : memref<8x16xf32, #tpu.memory_space<vmem>> -> memref<1x16xf32, #tpu.memory_space<vmem>>
    %3 = tpu.memref_slice %arg12[%c0_i32] : memref<8x!tpu.dma_semaphore, #tpu.memory_space<semaphore_mem>> -> memref<1x!tpu.dma_semaphore, #tpu.memory_space<semaphore_mem>>
    %4 = tpu.memref_squeeze %3 : memref<1x!tpu.dma_semaphore, #tpu.memory_space<semaphore_mem>> -> memref<!tpu.dma_semaphore, #tpu.memory_space<semaphore_mem>>
    tpu.enqueue_dma source(%1 : memref<1x16xf32, #tpu.memory_space<any>>) target(%2 : memref<1x16xf32, #tpu.memory_space<vmem>>) target_semaphore(%4 : memref<!tpu.dma_semaphore, #tpu.memory_space<semaphore_mem>>)
    %c0_3 = arith.constant 0 : index
    %5 = memref.load %arg2[%c0_3] : memref<8xi32, #tpu.memory_space<smem>>
    %c0_i32_4 = arith.constant 0 : i32
    %c0_i32_5 = arith.constant 0 : i32
    %6 = tpu.memref_slice %arg4[%5, %c0_i32_5] : memref<51x16xf32, #tpu.memory_space<any>> -> memref<1x16xf32, #tpu.memory_space<any>>
    %c0_i32_6 = arith.constant 0 : i32
    %c0_i32_7 = arith.constant 0 : i32
    %7 = tpu.memref_slice %arg11[%c0_i32_6, %c0_i32_7] : memref<8x16xf32, #tpu.memory_space<vmem>> -> memref<1x16xf32, #tpu.memory_space<vmem>>
    %8 = tpu.memref_slice %arg13[%c0_i32_4] : memref<8x!tpu.dma_semaphore, #tpu.memory_space<semaphore_mem>> -> memref<1x!tpu.dma_semaphore, #tpu.memory_space<semaphore_mem>>
    %9 = tpu.memref_squeeze %8 : memref<1x!tpu.dma_semaphore, #tpu.memory_space<semaphore_mem>> -> memref<!tpu.dma_semaphore, #tpu.memory_space<semaphore_mem>>
    tpu.enqueue_dma source(%6 : memref<1x16xf32, #tpu.memory_space<any>>) target(%7 : memref<1x16xf32, #tpu.memory_space<vmem>>) target_semaphore(%9 : memref<!tpu.dma_semaphore, #tpu.memory_space<semaphore_mem>>)
    %c1 = arith.constant 1 : index
    %10 = memref.load %arg1[%c1] : memref<8xi32, #tpu.memory_space<smem>>
    %c1_i32 = arith.constant 1 : i32
    %c0_i32_8 = arith.constant 0 : i32
    %11 = tpu.memref_slice %arg3[%10, %c0_i32_8] : memref<101x16xf32, #tpu.memory_space<any>> -> memref<1x16xf32, #tpu.memory_space<any>>
    %c1_i32_9 = arith.constant 1 : i32
    %c0_i32_10 = arith.constant 0 : i32
    %12 = tpu.memref_slice %arg10[%c1_i32_9, %c0_i32_10] : memref<8x16xf32, #tpu.memory_space<vmem>> -> memref<1x16xf32, #tpu.memory_space<vmem>>
    %13 = tpu.memref_slice %arg12[%c1_i32] : memref<8x!tpu.dma_semaphore, #tpu.memory_space<semaphore_mem>> -> memref<1x!tpu.dma_semaphore, #tpu.memory_space<semaphore_mem>>
    %14 = tpu.memref_squeeze %13 : memref<1x!tpu.dma_semaphore, #tpu.memory_space<semaphore_mem>> -> memref<!tpu.dma_semaphore, #tpu.memory_space<semaphore_mem>>
    tpu.enqueue_dma source(%11 : memref<1x16xf32, #tpu.memory_space<any>>) target(%12 : memref<1x16xf32, #tpu.memory_space<vmem>>) target_semaphore(%14 : memref<!tpu.dma_semaphore, #tpu.memory_space<semaphore_mem>>)
    %c1_11 = arith.constant 1 : index
    %15 = memref.load %arg2[%c1_11] : memref<8xi32, #tpu.memory_space<smem>>
    %c1_i32_12 = arith.constant 1 : i32
    %c0_i32_13 = arith.constant 0 : i32
    %16 = tpu.memref_slice %arg4[%15, %c0_i32_13] : memref<51x16xf32, #tpu.memory_space<any>> -> memref<1x16xf32, #tpu.memory_space<any>>
    %c1_i32_14 = arith.constant 1 : i32
    %c0_i32_15 = arith.constant 0 : i32
    %17 = tpu.memref_slice %arg11[%c1_i32_14, %c0_i32_15] : memref<8x16xf32, #tpu.memory_space<vmem>> -> memref<1x16xf32, #tpu.memory_space<vmem>>
    %18 = tpu.memref_slice %arg13[%c1_i32_12] : memref<8x!tpu.dma_semaphore, #tpu.memory_space<semaphore_mem>> -> memref<1x!tpu.dma_semaphore, #tpu.memory_space<semaphore_mem>>
    %19 = tpu.memref_squeeze %18 : memref<1x!tpu.dma_semaphore, #tpu.memory_space<semaphore_mem>> -> memref<!tpu.dma_semaphore, #tpu.memory_space<semaphore_mem>>
    tpu.enqueue_dma source(%16 : memref<1x16xf32, #tpu.memory_space<any>>) target(%17 : memref<1x16xf32, #tpu.memory_space<vmem>>) target_semaphore(%19 : memref<!tpu.dma_semaphore, #tpu.memory_space<semaphore_mem>>)
    %c2 = arith.constant 2 : index
    %20 = memref.load %arg1[%c2] : memref<8xi32, #tpu.memory_space<smem>>
    %c2_i32 = arith.constant 2 : i32
    %c0_i32_16 = arith.constant 0 : i32
    %21 = tpu.memref_slice %arg3[%20, %c0_i32_16] : memref<101x16xf32, #tpu.memory_space<any>> -> memref<1x16xf32, #tpu.memory_space<any>>
    %c2_i32_17 = arith.constant 2 : i32
    %c0_i32_18 = arith.constant 0 : i32
    %22 = tpu.memref_slice %arg10[%c2_i32_17, %c0_i32_18] : memref<8x16xf32, #tpu.memory_space<vmem>> -> memref<1x16xf32, #tpu.memory_space<vmem>>
    %23 = tpu.memref_slice %arg12[%c2_i32] : memref<8x!tpu.dma_semaphore, #tpu.memory_space<semaphore_mem>> -> memref<1x!tpu.dma_semaphore, #tpu.memory_space<semaphore_mem>>
    %24 = tpu.memref_squeeze %23 : memref<1x!tpu.dma_semaphore, #tpu.memory_space<semaphore_mem>> -> memref<!tpu.dma_semaphore, #tpu.memory_space<semaphore_mem>>
    tpu.enqueue_dma source(%21 : memref<1x16xf32, #tpu.memory_space<any>>) target(%22 : memref<1x16xf32, #tpu.memory_space<vmem>>) target_semaphore(%24 : memref<!tpu.dma_semaphore, #tpu.memory_space<semaphore_mem>>)
    %c2_19 = arith.constant 2 : index
    %25 = memref.load %arg2[%c2_19] : memref<8xi32, #tpu.memory_space<smem>>
    %c2_i32_20 = arith.constant 2 : i32
    %c0_i32_21 = arith.constant 0 : i32
    %26 = tpu.memref_slice %arg4[%25, %c0_i32_21] : memref<51x16xf32, #tpu.memory_space<any>> -> memref<1x16xf32, #tpu.memory_space<any>>
    %c2_i32_22 = arith.constant 2 : i32
    %c0_i32_23 = arith.constant 0 : i32
    %27 = tpu.memref_slice %arg11[%c2_i32_22, %c0_i32_23] : memref<8x16xf32, #tpu.memory_space<vmem>> -> memref<1x16xf32, #tpu.memory_space<vmem>>
    %28 = tpu.memref_slice %arg13[%c2_i32_20] : memref<8x!tpu.dma_semaphore, #tpu.memory_space<semaphore_mem>> -> memref<1x!tpu.dma_semaphore, #tpu.memory_space<semaphore_mem>>
    %29 = tpu.memref_squeeze %28 : memref<1x!tpu.dma_semaphore, #tpu.memory_space<semaphore_mem>> -> memref<!tpu.dma_semaphore, #tpu.memory_space<semaphore_mem>>
    tpu.enqueue_dma source(%26 : memref<1x16xf32, #tpu.memory_space<any>>) target(%27 : memref<1x16xf32, #tpu.memory_space<vmem>>) target_semaphore(%29 : memref<!tpu.dma_semaphore, #tpu.memory_space<semaphore_mem>>)
    %c3 = arith.constant 3 : index
    %30 = memref.load %arg1[%c3] : memref<8xi32, #tpu.memory_space<smem>>
    %c3_i32 = arith.constant 3 : i32
    %c0_i32_24 = arith.constant 0 : i32
    %31 = tpu.memref_slice %arg3[%30, %c0_i32_24] : memref<101x16xf32, #tpu.memory_space<any>> -> memref<1x16xf32, #tpu.memory_space<any>>
    %c3_i32_25 = arith.constant 3 : i32
    %c0_i32_26 = arith.constant 0 : i32
    %32 = tpu.memref_slice %arg10[%c3_i32_25, %c0_i32_26] : memref<8x16xf32, #tpu.memory_space<vmem>> -> memref<1x16xf32, #tpu.memory_space<vmem>>
    %33 = tpu.memref_slice %arg12[%c3_i32] : memref<8x!tpu.dma_semaphore, #tpu.memory_space<semaphore_mem>> -> memref<1x!tpu.dma_semaphore, #tpu.memory_space<semaphore_mem>>
    %34 = tpu.memref_squeeze %33 : memref<1x!tpu.dma_semaphore, #tpu.memory_space<semaphore_mem>> -> memref<!tpu.dma_semaphore, #tpu.memory_space<semaphore_mem>>
    tpu.enqueue_dma source(%31 : memref<1x16xf32, #tpu.memory_space<any>>) target(%32 : memref<1x16xf32, #tpu.memory_space<vmem>>) target_semaphore(%34 : memref<!tpu.dma_semaphore, #tpu.memory_space<semaphore_mem>>)
    %c3_27 = arith.constant 3 : index
    %35 = memref.load %arg2[%c3_27] : memref<8xi32, #tpu.memory_space<smem>>
    %c3_i32_28 = arith.constant 3 : i32
    %c0_i32_29 = arith.constant 0 : i32
    %36 = tpu.memref_slice %arg4[%35, %c0_i32_29] : memref<51x16xf32, #tpu.memory_space<any>> -> memref<1x16xf32, #tpu.memory_space<any>>
    %c3_i32_30 = arith.constant 3 : i32
    %c0_i32_31 = arith.constant 0 : i32
    %37 = tpu.memref_slice %arg11[%c3_i32_30, %c0_i32_31] : memref<8x16xf32, #tpu.memory_space<vmem>> -> memref<1x16xf32, #tpu.memory_space<vmem>>
    %38 = tpu.memref_slice %arg13[%c3_i32_28] : memref<8x!tpu.dma_semaphore, #tpu.memory_space<semaphore_mem>> -> memref<1x!tpu.dma_semaphore, #tpu.memory_space<semaphore_mem>>
    %39 = tpu.memref_squeeze %38 : memref<1x!tpu.dma_semaphore, #tpu.memory_space<semaphore_mem>> -> memref<!tpu.dma_semaphore, #tpu.memory_space<semaphore_mem>>
    tpu.enqueue_dma source(%36 : memref<1x16xf32, #tpu.memory_space<any>>) target(%37 : memref<1x16xf32, #tpu.memory_space<vmem>>) target_semaphore(%39 : memref<!tpu.dma_semaphore, #tpu.memory_space<semaphore_mem>>)
    %c4 = arith.constant 4 : index
    %40 = memref.load %arg1[%c4] : memref<8xi32, #tpu.memory_space<smem>>
    %c4_i32 = arith.constant 4 : i32
    %c0_i32_32 = arith.constant 0 : i32
    %41 = tpu.memref_slice %arg3[%40, %c0_i32_32] : memref<101x16xf32, #tpu.memory_space<any>> -> memref<1x16xf32, #tpu.memory_space<any>>
    %c4_i32_33 = arith.constant 4 : i32
    %c0_i32_34 = arith.constant 0 : i32
    %42 = tpu.memref_slice %arg10[%c4_i32_33, %c0_i32_34] : memref<8x16xf32, #tpu.memory_space<vmem>> -> memref<1x16xf32, #tpu.memory_space<vmem>>
    %43 = tpu.memref_slice %arg12[%c4_i32] : memref<8x!tpu.dma_semaphore, #tpu.memory_space<semaphore_mem>> -> memref<1x!tpu.dma_semaphore, #tpu.memory_space<semaphore_mem>>
    %44 = tpu.memref_squeeze %43 : memref<1x!tpu.dma_semaphore, #tpu.memory_space<semaphore_mem>> -> memref<!tpu.dma_semaphore, #tpu.memory_space<semaphore_mem>>
    tpu.enqueue_dma source(%41 : memref<1x16xf32, #tpu.memory_space<any>>) target(%42 : memref<1x16xf32, #tpu.memory_space<vmem>>) target_semaphore(%44 : memref<!tpu.dma_semaphore, #tpu.memory_space<semaphore_mem>>)
    %c4_35 = arith.constant 4 : index
    %45 = memref.load %arg2[%c4_35] : memref<8xi32, #tpu.memory_space<smem>>
    %c4_i32_36 = arith.constant 4 : i32
    %c0_i32_37 = arith.constant 0 : i32
    %46 = tpu.memref_slice %arg4[%45, %c0_i32_37] : memref<51x16xf32, #tpu.memory_space<any>> -> memref<1x16xf32, #tpu.memory_space<any>>
    %c4_i32_38 = arith.constant 4 : i32
    %c0_i32_39 = arith.constant 0 : i32
    %47 = tpu.memref_slice %arg11[%c4_i32_38, %c0_i32_39] : memref<8x16xf32, #tpu.memory_space<vmem>> -> memref<1x16xf32, #tpu.memory_space<vmem>>
    %48 = tpu.memref_slice %arg13[%c4_i32_36] : memref<8x!tpu.dma_semaphore, #tpu.memory_space<semaphore_mem>> -> memref<1x!tpu.dma_semaphore, #tpu.memory_space<semaphore_mem>>
    %49 = tpu.memref_squeeze %48 : memref<1x!tpu.dma_semaphore, #tpu.memory_space<semaphore_mem>> -> memref<!tpu.dma_semaphore, #tpu.memory_space<semaphore_mem>>
    tpu.enqueue_dma source(%46 : memref<1x16xf32, #tpu.memory_space<any>>) target(%47 : memref<1x16xf32, #tpu.memory_space<vmem>>) target_semaphore(%49 : memref<!tpu.dma_semaphore, #tpu.memory_space<semaphore_mem>>)
    %c5 = arith.constant 5 : index
    %50 = memref.load %arg1[%c5] : memref<8xi32, #tpu.memory_space<smem>>
    %c5_i32 = arith.constant 5 : i32
    %c0_i32_40 = arith.constant 0 : i32
    %51 = tpu.memref_slice %arg3[%50, %c0_i32_40] : memref<101x16xf32, #tpu.memory_space<any>> -> memref<1x16xf32, #tpu.memory_space<any>>
    %c5_i32_41 = arith.constant 5 : i32
    %c0_i32_42 = arith.constant 0 : i32
    %52 = tpu.memref_slice %arg10[%c5_i32_41, %c0_i32_42] : memref<8x16xf32, #tpu.memory_space<vmem>> -> memref<1x16xf32, #tpu.memory_space<vmem>>
    %53 = tpu.memref_slice %arg12[%c5_i32] : memref<8x!tpu.dma_semaphore, #tpu.memory_space<semaphore_mem>> -> memref<1x!tpu.dma_semaphore, #tpu.memory_space<semaphore_mem>>
    %54 = tpu.memref_squeeze %53 : memref<1x!tpu.dma_semaphore, #tpu.memory_space<semaphore_mem>> -> memref<!tpu.dma_semaphore, #tpu.memory_space<semaphore_mem>>
    tpu.enqueue_dma source(%51 : memref<1x16xf32, #tpu.memory_space<any>>) target(%52 : memref<1x16xf32, #tpu.memory_space<vmem>>) target_semaphore(%54 : memref<!tpu.dma_semaphore, #tpu.memory_space<semaphore_mem>>)
    %c5_43 = arith.constant 5 : index
    %55 = memref.load %arg2[%c5_43] : memref<8xi32, #tpu.memory_space<smem>>
    %c5_i32_44 = arith.constant 5 : i32
    %c0_i32_45 = arith.constant 0 : i32
    %56 = tpu.memref_slice %arg4[%55, %c0_i32_45] : memref<51x16xf32, #tpu.memory_space<any>> -> memref<1x16xf32, #tpu.memory_space<any>>
    %c5_i32_46 = arith.constant 5 : i32
    %c0_i32_47 = arith.constant 0 : i32
    %57 = tpu.memref_slice %arg11[%c5_i32_46, %c0_i32_47] : memref<8x16xf32, #tpu.memory_space<vmem>> -> memref<1x16xf32, #tpu.memory_space<vmem>>
    %58 = tpu.memref_slice %arg13[%c5_i32_44] : memref<8x!tpu.dma_semaphore, #tpu.memory_space<semaphore_mem>> -> memref<1x!tpu.dma_semaphore, #tpu.memory_space<semaphore_mem>>
    %59 = tpu.memref_squeeze %58 : memref<1x!tpu.dma_semaphore, #tpu.memory_space<semaphore_mem>> -> memref<!tpu.dma_semaphore, #tpu.memory_space<semaphore_mem>>
    tpu.enqueue_dma source(%56 : memref<1x16xf32, #tpu.memory_space<any>>) target(%57 : memref<1x16xf32, #tpu.memory_space<vmem>>) target_semaphore(%59 : memref<!tpu.dma_semaphore, #tpu.memory_space<semaphore_mem>>)
    %c6 = arith.constant 6 : index
    %60 = memref.load %arg1[%c6] : memref<8xi32, #tpu.memory_space<smem>>
    %c6_i32 = arith.constant 6 : i32
    %c0_i32_48 = arith.constant 0 : i32
    %61 = tpu.memref_slice %arg3[%60, %c0_i32_48] : memref<101x16xf32, #tpu.memory_space<any>> -> memref<1x16xf32, #tpu.memory_space<any>>
    %c6_i32_49 = arith.constant 6 : i32
    %c0_i32_50 = arith.constant 0 : i32
    %62 = tpu.memref_slice %arg10[%c6_i32_49, %c0_i32_50] : memref<8x16xf32, #tpu.memory_space<vmem>> -> memref<1x16xf32, #tpu.memory_space<vmem>>
    %63 = tpu.memref_slice %arg12[%c6_i32] : memref<8x!tpu.dma_semaphore, #tpu.memory_space<semaphore_mem>> -> memref<1x!tpu.dma_semaphore, #tpu.memory_space<semaphore_mem>>
    %64 = tpu.memref_squeeze %63 : memref<1x!tpu.dma_semaphore, #tpu.memory_space<semaphore_mem>> -> memref<!tpu.dma_semaphore, #tpu.memory_space<semaphore_mem>>
    tpu.enqueue_dma source(%61 : memref<1x16xf32, #tpu.memory_space<any>>) target(%62 : memref<1x16xf32, #tpu.memory_space<vmem>>) target_semaphore(%64 : memref<!tpu.dma_semaphore, #tpu.memory_space<semaphore_mem>>)
    %c6_51 = arith.constant 6 : index
    %65 = memref.load %arg2[%c6_51] : memref<8xi32, #tpu.memory_space<smem>>
    %c6_i32_52 = arith.constant 6 : i32
    %c0_i32_53 = arith.constant 0 : i32
    %66 = tpu.memref_slice %arg4[%65, %c0_i32_53] : memref<51x16xf32, #tpu.memory_space<any>> -> memref<1x16xf32, #tpu.memory_space<any>>
    %c6_i32_54 = arith.constant 6 : i32
    %c0_i32_55 = arith.constant 0 : i32
    %67 = tpu.memref_slice %arg11[%c6_i32_54, %c0_i32_55] : memref<8x16xf32, #tpu.memory_space<vmem>> -> memref<1x16xf32, #tpu.memory_space<vmem>>
    %68 = tpu.memref_slice %arg13[%c6_i32_52] : memref<8x!tpu.dma_semaphore, #tpu.memory_space<semaphore_mem>> -> memref<1x!tpu.dma_semaphore, #tpu.memory_space<semaphore_mem>>
    %69 = tpu.memref_squeeze %68 : memref<1x!tpu.dma_semaphore, #tpu.memory_space<semaphore_mem>> -> memref<!tpu.dma_semaphore, #tpu.memory_space<semaphore_mem>>
    tpu.enqueue_dma source(%66 : memref<1x16xf32, #tpu.memory_space<any>>) target(%67 : memref<1x16xf32, #tpu.memory_space<vmem>>) target_semaphore(%69 : memref<!tpu.dma_semaphore, #tpu.memory_space<semaphore_mem>>)
    %c7 = arith.constant 7 : index
    %70 = memref.load %arg1[%c7] : memref<8xi32, #tpu.memory_space<smem>>
    %c7_i32 = arith.constant 7 : i32
    %c0_i32_56 = arith.constant 0 : i32
    %71 = tpu.memref_slice %arg3[%70, %c0_i32_56] : memref<101x16xf32, #tpu.memory_space<any>> -> memref<1x16xf32, #tpu.memory_space<any>>
    %c7_i32_57 = arith.constant 7 : i32
    %c0_i32_58 = arith.constant 0 : i32
    %72 = tpu.memref_slice %arg10[%c7_i32_57, %c0_i32_58] : memref<8x16xf32, #tpu.memory_space<vmem>> -> memref<1x16xf32, #tpu.memory_space<vmem>>
    %73 = tpu.memref_slice %arg12[%c7_i32] : memref<8x!tpu.dma_semaphore, #tpu.memory_space<semaphore_mem>> -> memref<1x!tpu.dma_semaphore, #tpu.memory_space<semaphore_mem>>
    %74 = tpu.memref_squeeze %73 : memref<1x!tpu.dma_semaphore, #tpu.memory_space<semaphore_mem>> -> memref<!tpu.dma_semaphore, #tpu.memory_space<semaphore_mem>>
    tpu.enqueue_dma source(%71 : memref<1x16xf32, #tpu.memory_space<any>>) target(%72 : memref<1x16xf32, #tpu.memory_space<vmem>>) target_semaphore(%74 : memref<!tpu.dma_semaphore, #tpu.memory_space<semaphore_mem>>)
    %c7_59 = arith.constant 7 : index
    %75 = memref.load %arg2[%c7_59] : memref<8xi32, #tpu.memory_space<smem>>
    %c7_i32_60 = arith.constant 7 : i32
    %c0_i32_61 = arith.constant 0 : i32
    %76 = tpu.memref_slice %arg4[%75, %c0_i32_61] : memref<51x16xf32, #tpu.memory_space<any>> -> memref<1x16xf32, #tpu.memory_space<any>>
    %c7_i32_62 = arith.constant 7 : i32
    %c0_i32_63 = arith.constant 0 : i32
    %77 = tpu.memref_slice %arg11[%c7_i32_62, %c0_i32_63] : memref<8x16xf32, #tpu.memory_space<vmem>> -> memref<1x16xf32, #tpu.memory_space<vmem>>
    %78 = tpu.memref_slice %arg13[%c7_i32_60] : memref<8x!tpu.dma_semaphore, #tpu.memory_space<semaphore_mem>> -> memref<1x!tpu.dma_semaphore, #tpu.memory_space<semaphore_mem>>
    %79 = tpu.memref_squeeze %78 : memref<1x!tpu.dma_semaphore, #tpu.memory_space<semaphore_mem>> -> memref<!tpu.dma_semaphore, #tpu.memory_space<semaphore_mem>>
    tpu.enqueue_dma source(%76 : memref<1x16xf32, #tpu.memory_space<any>>) target(%77 : memref<1x16xf32, #tpu.memory_space<vmem>>) target_semaphore(%79 : memref<!tpu.dma_semaphore, #tpu.memory_space<semaphore_mem>>)
    %c0_i32_64 = arith.constant 0 : i32
    %c0_i32_65 = arith.constant 0 : i32
    %c0_i32_66 = arith.constant 0 : i32
    %80 = tpu.memref_slice %arg3[%c0_i32_65, %c0_i32_66] : memref<101x16xf32, #tpu.memory_space<any>> -> memref<1x16xf32, #tpu.memory_space<any>>
    %c0_i32_67 = arith.constant 0 : i32
    %c0_i32_68 = arith.constant 0 : i32
    %81 = tpu.memref_slice %arg10[%c0_i32_67, %c0_i32_68] : memref<8x16xf32, #tpu.memory_space<vmem>> -> memref<1x16xf32, #tpu.memory_space<vmem>>
    %82 = tpu.memref_slice %arg12[%c0_i32_64] : memref<8x!tpu.dma_semaphore, #tpu.memory_space<semaphore_mem>> -> memref<1x!tpu.dma_semaphore, #tpu.memory_space<semaphore_mem>>
    %83 = tpu.memref_squeeze %82 : memref<1x!tpu.dma_semaphore, #tpu.memory_space<semaphore_mem>> -> memref<!tpu.dma_semaphore, #tpu.memory_space<semaphore_mem>>
    tpu.wait_dma2 semaphore(%83 : memref<!tpu.dma_semaphore, #tpu.memory_space<semaphore_mem>>) src(%80 : memref<1x16xf32, #tpu.memory_space<any>>) dst(%81 : memref<1x16xf32, #tpu.memory_space<vmem>>)
    %c0_i32_69 = arith.constant 0 : i32
    %c0_i32_70 = arith.constant 0 : i32
    %c0_i32_71 = arith.constant 0 : i32
    %84 = tpu.memref_slice %arg4[%c0_i32_70, %c0_i32_71] : memref<51x16xf32, #tpu.memory_space<any>> -> memref<1x16xf32, #tpu.memory_space<any>>
    %c0_i32_72 = arith.constant 0 : i32
    %c0_i32_73 = arith.constant 0 : i32
    %85 = tpu.memref_slice %arg11[%c0_i32_72, %c0_i32_73] : memref<8x16xf32, #tpu.memory_space<vmem>> -> memref<1x16xf32, #tpu.memory_space<vmem>>
    %86 = tpu.memref_slice %arg13[%c0_i32_69] : memref<8x!tpu.dma_semaphore, #tpu.memory_space<semaphore_mem>> -> memref<1x!tpu.dma_semaphore, #tpu.memory_space<semaphore_mem>>
    %87 = tpu.memref_squeeze %86 : memref<1x!tpu.dma_semaphore, #tpu.memory_space<semaphore_mem>> -> memref<!tpu.dma_semaphore, #tpu.memory_space<semaphore_mem>>
    tpu.wait_dma2 semaphore(%87 : memref<!tpu.dma_semaphore, #tpu.memory_space<semaphore_mem>>) src(%84 : memref<1x16xf32, #tpu.memory_space<any>>) dst(%85 : memref<1x16xf32, #tpu.memory_space<vmem>>)
    %c1_i32_74 = arith.constant 1 : i32
    %c0_i32_75 = arith.constant 0 : i32
    %c0_i32_76 = arith.constant 0 : i32
    %88 = tpu.memref_slice %arg3[%c0_i32_75, %c0_i32_76] : memref<101x16xf32, #tpu.memory_space<any>> -> memref<1x16xf32, #tpu.memory_space<any>>
    %c1_i32_77 = arith.constant 1 : i32
    %c0_i32_78 = arith.constant 0 : i32
    %89 = tpu.memref_slice %arg10[%c1_i32_77, %c0_i32_78] : memref<8x16xf32, #tpu.memory_space<vmem>> -> memref<1x16xf32, #tpu.memory_space<vmem>>
    %90 = tpu.memref_slice %arg12[%c1_i32_74] : memref<8x!tpu.dma_semaphore, #tpu.memory_space<semaphore_mem>> -> memref<1x!tpu.dma_semaphore, #tpu.memory_space<semaphore_mem>>
    %91 = tpu.memref_squeeze %90 : memref<1x!tpu.dma_semaphore, #tpu.memory_space<semaphore_mem>> -> memref<!tpu.dma_semaphore, #tpu.memory_space<semaphore_mem>>
    tpu.wait_dma2 semaphore(%91 : memref<!tpu.dma_semaphore, #tpu.memory_space<semaphore_mem>>) src(%88 : memref<1x16xf32, #tpu.memory_space<any>>) dst(%89 : memref<1x16xf32, #tpu.memory_space<vmem>>)
    %c1_i32_79 = arith.constant 1 : i32
    %c0_i32_80 = arith.constant 0 : i32
    %c0_i32_81 = arith.constant 0 : i32
    %92 = tpu.memref_slice %arg4[%c0_i32_80, %c0_i32_81] : memref<51x16xf32, #tpu.memory_space<any>> -> memref<1x16xf32, #tpu.memory_space<any>>
    %c1_i32_82 = arith.constant 1 : i32
    %c0_i32_83 = arith.constant 0 : i32
    %93 = tpu.memref_slice %arg11[%c1_i32_82, %c0_i32_83] : memref<8x16xf32, #tpu.memory_space<vmem>> -> memref<1x16xf32, #tpu.memory_space<vmem>>
    %94 = tpu.memref_slice %arg13[%c1_i32_79] : memref<8x!tpu.dma_semaphore, #tpu.memory_space<semaphore_mem>> -> memref<1x!tpu.dma_semaphore, #tpu.memory_space<semaphore_mem>>
    %95 = tpu.memref_squeeze %94 : memref<1x!tpu.dma_semaphore, #tpu.memory_space<semaphore_mem>> -> memref<!tpu.dma_semaphore, #tpu.memory_space<semaphore_mem>>
    tpu.wait_dma2 semaphore(%95 : memref<!tpu.dma_semaphore, #tpu.memory_space<semaphore_mem>>) src(%92 : memref<1x16xf32, #tpu.memory_space<any>>) dst(%93 : memref<1x16xf32, #tpu.memory_space<vmem>>)
    %c2_i32_84 = arith.constant 2 : i32
    %c0_i32_85 = arith.constant 0 : i32
    %c0_i32_86 = arith.constant 0 : i32
    %96 = tpu.memref_slice %arg3[%c0_i32_85, %c0_i32_86] : memref<101x16xf32, #tpu.memory_space<any>> -> memref<1x16xf32, #tpu.memory_space<any>>
    %c2_i32_87 = arith.constant 2 : i32
    %c0_i32_88 = arith.constant 0 : i32
    %97 = tpu.memref_slice %arg10[%c2_i32_87, %c0_i32_88] : memref<8x16xf32, #tpu.memory_space<vmem>> -> memref<1x16xf32, #tpu.memory_space<vmem>>
    %98 = tpu.memref_slice %arg12[%c2_i32_84] : memref<8x!tpu.dma_semaphore, #tpu.memory_space<semaphore_mem>> -> memref<1x!tpu.dma_semaphore, #tpu.memory_space<semaphore_mem>>
    %99 = tpu.memref_squeeze %98 : memref<1x!tpu.dma_semaphore, #tpu.memory_space<semaphore_mem>> -> memref<!tpu.dma_semaphore, #tpu.memory_space<semaphore_mem>>
    tpu.wait_dma2 semaphore(%99 : memref<!tpu.dma_semaphore, #tpu.memory_space<semaphore_mem>>) src(%96 : memref<1x16xf32, #tpu.memory_space<any>>) dst(%97 : memref<1x16xf32, #tpu.memory_space<vmem>>)
    %c2_i32_89 = arith.constant 2 : i32
    %c0_i32_90 = arith.constant 0 : i32
    %c0_i32_91 = arith.constant 0 : i32
    %100 = tpu.memref_slice %arg4[%c0_i32_90, %c0_i32_91] : memref<51x16xf32, #tpu.memory_space<any>> -> memref<1x16xf32, #tpu.memory_space<any>>
    %c2_i32_92 = arith.constant 2 : i32
    %c0_i32_93 = arith.constant 0 : i32
    %101 = tpu.memref_slice %arg11[%c2_i32_92, %c0_i32_93] : memref<8x16xf32, #tpu.memory_space<vmem>> -> memref<1x16xf32, #tpu.memory_space<vmem>>
    %102 = tpu.memref_slice %arg13[%c2_i32_89] : memref<8x!tpu.dma_semaphore, #tpu.memory_space<semaphore_mem>> -> memref<1x!tpu.dma_semaphore, #tpu.memory_space<semaphore_mem>>
    %103 = tpu.memref_squeeze %102 : memref<1x!tpu.dma_semaphore, #tpu.memory_space<semaphore_mem>> -> memref<!tpu.dma_semaphore, #tpu.memory_space<semaphore_mem>>
    tpu.wait_dma2 semaphore(%103 : memref<!tpu.dma_semaphore, #tpu.memory_space<semaphore_mem>>) src(%100 : memref<1x16xf32, #tpu.memory_space<any>>) dst(%101 : memref<1x16xf32, #tpu.memory_space<vmem>>)
    %c3_i32_94 = arith.constant 3 : i32
    %c0_i32_95 = arith.constant 0 : i32
    %c0_i32_96 = arith.constant 0 : i32
    %104 = tpu.memref_slice %arg3[%c0_i32_95, %c0_i32_96] : memref<101x16xf32, #tpu.memory_space<any>> -> memref<1x16xf32, #tpu.memory_space<any>>
    %c3_i32_97 = arith.constant 3 : i32
    %c0_i32_98 = arith.constant 0 : i32
    %105 = tpu.memref_slice %arg10[%c3_i32_97, %c0_i32_98] : memref<8x16xf32, #tpu.memory_space<vmem>> -> memref<1x16xf32, #tpu.memory_space<vmem>>
    %106 = tpu.memref_slice %arg12[%c3_i32_94] : memref<8x!tpu.dma_semaphore, #tpu.memory_space<semaphore_mem>> -> memref<1x!tpu.dma_semaphore, #tpu.memory_space<semaphore_mem>>
    %107 = tpu.memref_squeeze %106 : memref<1x!tpu.dma_semaphore, #tpu.memory_space<semaphore_mem>> -> memref<!tpu.dma_semaphore, #tpu.memory_space<semaphore_mem>>
    tpu.wait_dma2 semaphore(%107 : memref<!tpu.dma_semaphore, #tpu.memory_space<semaphore_mem>>) src(%104 : memref<1x16xf32, #tpu.memory_space<any>>) dst(%105 : memref<1x16xf32, #tpu.memory_space<vmem>>)
    %c3_i32_99 = arith.constant 3 : i32
    %c0_i32_100 = arith.constant 0 : i32
    %c0_i32_101 = arith.constant 0 : i32
    %108 = tpu.memref_slice %arg4[%c0_i32_100, %c0_i32_101] : memref<51x16xf32, #tpu.memory_space<any>> -> memref<1x16xf32, #tpu.memory_space<any>>
    %c3_i32_102 = arith.constant 3 : i32
    %c0_i32_103 = arith.constant 0 : i32
    %109 = tpu.memref_slice %arg11[%c3_i32_102, %c0_i32_103] : memref<8x16xf32, #tpu.memory_space<vmem>> -> memref<1x16xf32, #tpu.memory_space<vmem>>
    %110 = tpu.memref_slice %arg13[%c3_i32_99] : memref<8x!tpu.dma_semaphore, #tpu.memory_space<semaphore_mem>> -> memref<1x!tpu.dma_semaphore, #tpu.memory_space<semaphore_mem>>
    %111 = tpu.memref_squeeze %110 : memref<1x!tpu.dma_semaphore, #tpu.memory_space<semaphore_mem>> -> memref<!tpu.dma_semaphore, #tpu.memory_space<semaphore_mem>>
    tpu.wait_dma2 semaphore(%111 : memref<!tpu.dma_semaphore, #tpu.memory_space<semaphore_mem>>) src(%108 : memref<1x16xf32, #tpu.memory_space<any>>) dst(%109 : memref<1x16xf32, #tpu.memory_space<vmem>>)
    %c4_i32_104 = arith.constant 4 : i32
    %c0_i32_105 = arith.constant 0 : i32
    %c0_i32_106 = arith.constant 0 : i32
    %112 = tpu.memref_slice %arg3[%c0_i32_105, %c0_i32_106] : memref<101x16xf32, #tpu.memory_space<any>> -> memref<1x16xf32, #tpu.memory_space<any>>
    %c4_i32_107 = arith.constant 4 : i32
    %c0_i32_108 = arith.constant 0 : i32
    %113 = tpu.memref_slice %arg10[%c4_i32_107, %c0_i32_108] : memref<8x16xf32, #tpu.memory_space<vmem>> -> memref<1x16xf32, #tpu.memory_space<vmem>>
    %114 = tpu.memref_slice %arg12[%c4_i32_104] : memref<8x!tpu.dma_semaphore, #tpu.memory_space<semaphore_mem>> -> memref<1x!tpu.dma_semaphore, #tpu.memory_space<semaphore_mem>>
    %115 = tpu.memref_squeeze %114 : memref<1x!tpu.dma_semaphore, #tpu.memory_space<semaphore_mem>> -> memref<!tpu.dma_semaphore, #tpu.memory_space<semaphore_mem>>
    tpu.wait_dma2 semaphore(%115 : memref<!tpu.dma_semaphore, #tpu.memory_space<semaphore_mem>>) src(%112 : memref<1x16xf32, #tpu.memory_space<any>>) dst(%113 : memref<1x16xf32, #tpu.memory_space<vmem>>)
    %c4_i32_109 = arith.constant 4 : i32
    %c0_i32_110 = arith.constant 0 : i32
    %c0_i32_111 = arith.constant 0 : i32
    %116 = tpu.memref_slice %arg4[%c0_i32_110, %c0_i32_111] : memref<51x16xf32, #tpu.memory_space<any>> -> memref<1x16xf32, #tpu.memory_space<any>>
    %c4_i32_112 = arith.constant 4 : i32
    %c0_i32_113 = arith.constant 0 : i32
    %117 = tpu.memref_slice %arg11[%c4_i32_112, %c0_i32_113] : memref<8x16xf32, #tpu.memory_space<vmem>> -> memref<1x16xf32, #tpu.memory_space<vmem>>
    %118 = tpu.memref_slice %arg13[%c4_i32_109] : memref<8x!tpu.dma_semaphore, #tpu.memory_space<semaphore_mem>> -> memref<1x!tpu.dma_semaphore, #tpu.memory_space<semaphore_mem>>
    %119 = tpu.memref_squeeze %118 : memref<1x!tpu.dma_semaphore, #tpu.memory_space<semaphore_mem>> -> memref<!tpu.dma_semaphore, #tpu.memory_space<semaphore_mem>>
    tpu.wait_dma2 semaphore(%119 : memref<!tpu.dma_semaphore, #tpu.memory_space<semaphore_mem>>) src(%116 : memref<1x16xf32, #tpu.memory_space<any>>) dst(%117 : memref<1x16xf32, #tpu.memory_space<vmem>>)
    %c5_i32_114 = arith.constant 5 : i32
    %c0_i32_115 = arith.constant 0 : i32
    %c0_i32_116 = arith.constant 0 : i32
    %120 = tpu.memref_slice %arg3[%c0_i32_115, %c0_i32_116] : memref<101x16xf32, #tpu.memory_space<any>> -> memref<1x16xf32, #tpu.memory_space<any>>
    %c5_i32_117 = arith.constant 5 : i32
    %c0_i32_118 = arith.constant 0 : i32
    %121 = tpu.memref_slice %arg10[%c5_i32_117, %c0_i32_118] : memref<8x16xf32, #tpu.memory_space<vmem>> -> memref<1x16xf32, #tpu.memory_space<vmem>>
    %122 = tpu.memref_slice %arg12[%c5_i32_114] : memref<8x!tpu.dma_semaphore, #tpu.memory_space<semaphore_mem>> -> memref<1x!tpu.dma_semaphore, #tpu.memory_space<semaphore_mem>>
    %123 = tpu.memref_squeeze %122 : memref<1x!tpu.dma_semaphore, #tpu.memory_space<semaphore_mem>> -> memref<!tpu.dma_semaphore, #tpu.memory_space<semaphore_mem>>
    tpu.wait_dma2 semaphore(%123 : memref<!tpu.dma_semaphore, #tpu.memory_space<semaphore_mem>>) src(%120 : memref<1x16xf32, #tpu.memory_space<any>>) dst(%121 : memref<1x16xf32, #tpu.memory_space<vmem>>)
    %c5_i32_119 = arith.constant 5 : i32
    %c0_i32_120 = arith.constant 0 : i32
    %c0_i32_121 = arith.constant 0 : i32
    %124 = tpu.memref_slice %arg4[%c0_i32_120, %c0_i32_121] : memref<51x16xf32, #tpu.memory_space<any>> -> memref<1x16xf32, #tpu.memory_space<any>>
    %c5_i32_122 = arith.constant 5 : i32
    %c0_i32_123 = arith.constant 0 : i32
    %125 = tpu.memref_slice %arg11[%c5_i32_122, %c0_i32_123] : memref<8x16xf32, #tpu.memory_space<vmem>> -> memref<1x16xf32, #tpu.memory_space<vmem>>
    %126 = tpu.memref_slice %arg13[%c5_i32_119] : memref<8x!tpu.dma_semaphore, #tpu.memory_space<semaphore_mem>> -> memref<1x!tpu.dma_semaphore, #tpu.memory_space<semaphore_mem>>
    %127 = tpu.memref_squeeze %126 : memref<1x!tpu.dma_semaphore, #tpu.memory_space<semaphore_mem>> -> memref<!tpu.dma_semaphore, #tpu.memory_space<semaphore_mem>>
    tpu.wait_dma2 semaphore(%127 : memref<!tpu.dma_semaphore, #tpu.memory_space<semaphore_mem>>) src(%124 : memref<1x16xf32, #tpu.memory_space<any>>) dst(%125 : memref<1x16xf32, #tpu.memory_space<vmem>>)
    %c6_i32_124 = arith.constant 6 : i32
    %c0_i32_125 = arith.constant 0 : i32
    %c0_i32_126 = arith.constant 0 : i32
    %128 = tpu.memref_slice %arg3[%c0_i32_125, %c0_i32_126] : memref<101x16xf32, #tpu.memory_space<any>> -> memref<1x16xf32, #tpu.memory_space<any>>
    %c6_i32_127 = arith.constant 6 : i32
    %c0_i32_128 = arith.constant 0 : i32
    %129 = tpu.memref_slice %arg10[%c6_i32_127, %c0_i32_128] : memref<8x16xf32, #tpu.memory_space<vmem>> -> memref<1x16xf32, #tpu.memory_space<vmem>>
    %130 = tpu.memref_slice %arg12[%c6_i32_124] : memref<8x!tpu.dma_semaphore, #tpu.memory_space<semaphore_mem>> -> memref<1x!tpu.dma_semaphore, #tpu.memory_space<semaphore_mem>>
    %131 = tpu.memref_squeeze %130 : memref<1x!tpu.dma_semaphore, #tpu.memory_space<semaphore_mem>> -> memref<!tpu.dma_semaphore, #tpu.memory_space<semaphore_mem>>
    tpu.wait_dma2 semaphore(%131 : memref<!tpu.dma_semaphore, #tpu.memory_space<semaphore_mem>>) src(%128 : memref<1x16xf32, #tpu.memory_space<any>>) dst(%129 : memref<1x16xf32, #tpu.memory_space<vmem>>)
    %c6_i32_129 = arith.constant 6 : i32
    %c0_i32_130 = arith.constant 0 : i32
    %c0_i32_131 = arith.constant 0 : i32
    %132 = tpu.memref_slice %arg4[%c0_i32_130, %c0_i32_131] : memref<51x16xf32, #tpu.memory_space<any>> -> memref<1x16xf32, #tpu.memory_space<any>>
    %c6_i32_132 = arith.constant 6 : i32
    %c0_i32_133 = arith.constant 0 : i32
    %133 = tpu.memref_slice %arg11[%c6_i32_132, %c0_i32_133] : memref<8x16xf32, #tpu.memory_space<vmem>> -> memref<1x16xf32, #tpu.memory_space<vmem>>
    %134 = tpu.memref_slice %arg13[%c6_i32_129] : memref<8x!tpu.dma_semaphore, #tpu.memory_space<semaphore_mem>> -> memref<1x!tpu.dma_semaphore, #tpu.memory_space<semaphore_mem>>
    %135 = tpu.memref_squeeze %134 : memref<1x!tpu.dma_semaphore, #tpu.memory_space<semaphore_mem>> -> memref<!tpu.dma_semaphore, #tpu.memory_space<semaphore_mem>>
    tpu.wait_dma2 semaphore(%135 : memref<!tpu.dma_semaphore, #tpu.memory_space<semaphore_mem>>) src(%132 : memref<1x16xf32, #tpu.memory_space<any>>) dst(%133 : memref<1x16xf32, #tpu.memory_space<vmem>>)
    %c7_i32_134 = arith.constant 7 : i32
    %c0_i32_135 = arith.constant 0 : i32
    %c0_i32_136 = arith.constant 0 : i32
    %136 = tpu.memref_slice %arg3[%c0_i32_135, %c0_i32_136] : memref<101x16xf32, #tpu.memory_space<any>> -> memref<1x16xf32, #tpu.memory_space<any>>
    %c7_i32_137 = arith.constant 7 : i32
    %c0_i32_138 = arith.constant 0 : i32
    %137 = tpu.memref_slice %arg10[%c7_i32_137, %c0_i32_138] : memref<8x16xf32, #tpu.memory_space<vmem>> -> memref<1x16xf32, #tpu.memory_space<vmem>>
    %138 = tpu.memref_slice %arg12[%c7_i32_134] : memref<8x!tpu.dma_semaphore, #tpu.memory_space<semaphore_mem>> -> memref<1x!tpu.dma_semaphore, #tpu.memory_space<semaphore_mem>>
    %139 = tpu.memref_squeeze %138 : memref<1x!tpu.dma_semaphore, #tpu.memory_space<semaphore_mem>> -> memref<!tpu.dma_semaphore, #tpu.memory_space<semaphore_mem>>
    tpu.wait_dma2 semaphore(%139 : memref<!tpu.dma_semaphore, #tpu.memory_space<semaphore_mem>>) src(%136 : memref<1x16xf32, #tpu.memory_space<any>>) dst(%137 : memref<1x16xf32, #tpu.memory_space<vmem>>)
    %c7_i32_139 = arith.constant 7 : i32
    %c0_i32_140 = arith.constant 0 : i32
    %c0_i32_141 = arith.constant 0 : i32
    %140 = tpu.memref_slice %arg4[%c0_i32_140, %c0_i32_141] : memref<51x16xf32, #tpu.memory_space<any>> -> memref<1x16xf32, #tpu.memory_space<any>>
    %c7_i32_142 = arith.constant 7 : i32
    %c0_i32_143 = arith.constant 0 : i32
    %141 = tpu.memref_slice %arg11[%c7_i32_142, %c0_i32_143] : memref<8x16xf32, #tpu.memory_space<vmem>> -> memref<1x16xf32, #tpu.memory_space<vmem>>
    %142 = tpu.memref_slice %arg13[%c7_i32_139] : memref<8x!tpu.dma_semaphore, #tpu.memory_space<semaphore_mem>> -> memref<1x!tpu.dma_semaphore, #tpu.memory_space<semaphore_mem>>
    %143 = tpu.memref_squeeze %142 : memref<1x!tpu.dma_semaphore, #tpu.memory_space<semaphore_mem>> -> memref<!tpu.dma_semaphore, #tpu.memory_space<semaphore_mem>>
    tpu.wait_dma2 semaphore(%143 : memref<!tpu.dma_semaphore, #tpu.memory_space<semaphore_mem>>) src(%140 : memref<1x16xf32, #tpu.memory_space<any>>) dst(%141 : memref<1x16xf32, #tpu.memory_space<vmem>>)
    %c0_144 = arith.constant 0 : index
    %c0_145 = arith.constant 0 : index
    %144 = vector.load %arg10[%c0_144, %c0_145] : memref<8x16xf32, #tpu.memory_space<vmem>>, vector<8x16xf32>
    %c0_146 = arith.constant 0 : index
    %c0_147 = arith.constant 0 : index
    %145 = vector.load %arg11[%c0_146, %c0_147] : memref<8x16xf32, #tpu.memory_space<vmem>>, vector<8x16xf32>
    %146 = arith.truncf %144 : vector<8x16xf32> to vector<8x16xbf16>
    %c0_148 = arith.constant 0 : index
    %c0_149 = arith.constant 0 : index
    %147 = vector.load %arg5[%c0_148, %c0_149] : memref<32x64xbf16, #tpu.memory_space<vmem>>, vector<16x64xbf16>
    %cst = arith.constant dense<0.000000e+00> : vector<8x64xf32>
    %148 = tpu.matmul %146, %147, %cst {dimension_numbers = #tpu.dot_dimension_numbers<[1], [0], [0], [1], [0, 0, 1, 1], [], []>} : vector<8x16xbf16>, vector<16x64xbf16>, vector<8x64xf32> -> vector<8x64xf32>
    %149 = arith.truncf %145 : vector<8x16xf32> to vector<8x16xbf16>
    %c16 = arith.constant 16 : index
    %c0_150 = arith.constant 0 : index
    %150 = vector.load %arg5[%c16, %c0_150] : memref<32x64xbf16, #tpu.memory_space<vmem>>, vector<16x64xbf16>
    %cst_151 = arith.constant dense<0.000000e+00> : vector<8x64xf32>
    %151 = tpu.matmul %149, %150, %cst_151 {dimension_numbers = #tpu.dot_dimension_numbers<[1], [0], [0], [1], [0, 0, 1, 1], [], []>} : vector<8x16xbf16>, vector<16x64xbf16>, vector<8x64xf32> -> vector<8x64xf32>
    %152 = arith.addf %148, %151 : vector<8x64xf32>
    %c0_152 = arith.constant 0 : index
    %c0_153 = arith.constant 0 : index
    %153 = vector.load %arg8[%c0_152, %c0_153] : memref<6x64xf32, #tpu.memory_space<vmem>>, vector<1x64xf32>
    %c1_154 = arith.constant 1 : index
    %c0_155 = arith.constant 0 : index
    %154 = vector.load %arg8[%c1_154, %c0_155] : memref<6x64xf32, #tpu.memory_space<vmem>>, vector<1x64xf32>
    %cst_156 = arith.constant dense<0.000000e+00> : vector<64xf32>
    %155 = vector.multi_reduction <add>, %152, %cst_156 [0] : vector<8x64xf32> to vector<64xf32>
    %156 = vector.shape_cast %155 : vector<64xf32> to vector<1x64xf32>
    %cst_157 = arith.constant 8.000000e+00 : f32
    %157 = vector.broadcast %cst_157 : f32 to vector<1x64xf32>
    %158 = arith.divf %156, %157 : vector<1x64xf32>
    %159 = vector.broadcast %158 : vector<1x64xf32> to vector<8x64xf32>
    %160 = arith.subf %152, %159 : vector<8x64xf32>
    %161 = arith.mulf %160, %160 : vector<8x64xf32>
    %cst_158 = arith.constant dense<0.000000e+00> : vector<64xf32>
    %162 = vector.multi_reduction <add>, %161, %cst_158 [0] : vector<8x64xf32> to vector<64xf32>
    %163 = vector.shape_cast %162 : vector<64xf32> to vector<1x64xf32>
    %cst_159 = arith.constant 8.000000e+00 : f32
    %164 = vector.broadcast %cst_159 : f32 to vector<1x64xf32>
    %165 = arith.divf %163, %164 : vector<1x64xf32>
    %cst_160 = arith.constant 9.99999974E-6 : f32
    %166 = vector.broadcast %cst_160 : f32 to vector<1x64xf32>
    %167 = arith.addf %165, %166 : vector<1x64xf32>
    %168 = math.rsqrt %167 : vector<1x64xf32>
    %169 = arith.mulf %153, %168 : vector<1x64xf32>
    %170 = arith.mulf %158, %169 : vector<1x64xf32>
    %171 = arith.subf %154, %170 : vector<1x64xf32>
    %172 = vector.broadcast %169 : vector<1x64xf32> to vector<8x64xf32>
    %173 = arith.mulf %152, %172 : vector<8x64xf32>
    %174 = vector.broadcast %171 : vector<1x64xf32> to vector<8x64xf32>
    %175 = arith.addf %173, %174 : vector<8x64xf32>
    %cst_161 = arith.constant 0.000000e+00 : f32
    %176 = vector.broadcast %cst_161 : f32 to vector<8x64xf32>
    %177 = arith.maximumf %175, %176 : vector<8x64xf32>
    %178 = arith.truncf %177 : vector<8x64xf32> to vector<8x64xbf16>
    %c0_162 = arith.constant 0 : index
    %c0_163 = arith.constant 0 : index
    %179 = vector.load %arg6[%c0_162, %c0_163] : memref<64x32xbf16, #tpu.memory_space<vmem>>, vector<64x32xbf16>
    %cst_164 = arith.constant dense<0.000000e+00> : vector<8x32xf32>
    %180 = tpu.matmul %178, %179, %cst_164 {dimension_numbers = #tpu.dot_dimension_numbers<[1], [0], [0], [1], [0, 0, 1, 1], [], []>} : vector<8x64xbf16>, vector<64x32xbf16>, vector<8x32xf32> -> vector<8x32xf32>
    %c2_165 = arith.constant 2 : index
    %c0_166 = arith.constant 0 : index
    %181 = vector.load %arg8[%c2_165, %c0_166] : memref<6x64xf32, #tpu.memory_space<vmem>>, vector<1x32xf32>
    %c3_167 = arith.constant 3 : index
    %c0_168 = arith.constant 0 : index
    %182 = vector.load %arg8[%c3_167, %c0_168] : memref<6x64xf32, #tpu.memory_space<vmem>>, vector<1x32xf32>
    %cst_169 = arith.constant dense<0.000000e+00> : vector<32xf32>
    %183 = vector.multi_reduction <add>, %180, %cst_169 [0] : vector<8x32xf32> to vector<32xf32>
    %184 = vector.shape_cast %183 : vector<32xf32> to vector<1x32xf32>
    %cst_170 = arith.constant 8.000000e+00 : f32
    %185 = vector.broadcast %cst_170 : f32 to vector<1x32xf32>
    %186 = arith.divf %184, %185 : vector<1x32xf32>
    %187 = vector.broadcast %186 : vector<1x32xf32> to vector<8x32xf32>
    %188 = arith.subf %180, %187 : vector<8x32xf32>
    %189 = arith.mulf %188, %188 : vector<8x32xf32>
    %cst_171 = arith.constant dense<0.000000e+00> : vector<32xf32>
    %190 = vector.multi_reduction <add>, %189, %cst_171 [0] : vector<8x32xf32> to vector<32xf32>
    %191 = vector.shape_cast %190 : vector<32xf32> to vector<1x32xf32>
    %cst_172 = arith.constant 8.000000e+00 : f32
    %192 = vector.broadcast %cst_172 : f32 to vector<1x32xf32>
    %193 = arith.divf %191, %192 : vector<1x32xf32>
    %cst_173 = arith.constant 9.99999974E-6 : f32
    %194 = vector.broadcast %cst_173 : f32 to vector<1x32xf32>
    %195 = arith.addf %193, %194 : vector<1x32xf32>
    %196 = math.rsqrt %195 : vector<1x32xf32>
    %197 = arith.mulf %181, %196 : vector<1x32xf32>
    %198 = arith.mulf %186, %197 : vector<1x32xf32>
    %199 = arith.subf %182, %198 : vector<1x32xf32>
    %200 = vector.broadcast %197 : vector<1x32xf32> to vector<8x32xf32>
    %201 = arith.mulf %180, %200 : vector<8x32xf32>
    %202 = vector.broadcast %199 : vector<1x32xf32> to vector<8x32xf32>
    %203 = arith.addf %201, %202 : vector<8x32xf32>
    %cst_174 = arith.constant 0.000000e+00 : f32
    %204 = vector.broadcast %cst_174 : f32 to vector<8x32xf32>
    %205 = arith.maximumf %203, %204 : vector<8x32xf32>
    %206 = arith.truncf %205 : vector<8x32xf32> to vector<8x32xbf16>
    %c0_175 = arith.constant 0 : index
    %c0_176 = arith.constant 0 : index
    %207 = vector.load %arg7[%c0_175, %c0_176] : memref<32x16xbf16, #tpu.memory_space<vmem>>, vector<32x16xbf16>
    %cst_177 = arith.constant dense<0.000000e+00> : vector<8x16xf32>
    %208 = tpu.matmul %206, %207, %cst_177 {dimension_numbers = #tpu.dot_dimension_numbers<[1], [0], [0], [1], [0, 0, 1, 1], [], []>} : vector<8x32xbf16>, vector<32x16xbf16>, vector<8x16xf32> -> vector<8x16xf32>
    %c4_178 = arith.constant 4 : index
    %c0_179 = arith.constant 0 : index
    %209 = vector.load %arg8[%c4_178, %c0_179] : memref<6x64xf32, #tpu.memory_space<vmem>>, vector<1x16xf32>
    %c5_180 = arith.constant 5 : index
    %c0_181 = arith.constant 0 : index
    %210 = vector.load %arg8[%c5_180, %c0_181] : memref<6x64xf32, #tpu.memory_space<vmem>>, vector<1x16xf32>
    %cst_182 = arith.constant dense<0.000000e+00> : vector<16xf32>
    %211 = vector.multi_reduction <add>, %208, %cst_182 [0] : vector<8x16xf32> to vector<16xf32>
    %212 = vector.shape_cast %211 : vector<16xf32> to vector<1x16xf32>
    %cst_183 = arith.constant 8.000000e+00 : f32
    %213 = vector.broadcast %cst_183 : f32 to vector<1x16xf32>
    %214 = arith.divf %212, %213 : vector<1x16xf32>
    %215 = vector.broadcast %214 : vector<1x16xf32> to vector<8x16xf32>
    %216 = arith.subf %208, %215 : vector<8x16xf32>
    %217 = arith.mulf %216, %216 : vector<8x16xf32>
    %cst_184 = arith.constant dense<0.000000e+00> : vector<16xf32>
    %218 = vector.multi_reduction <add>, %217, %cst_184 [0] : vector<8x16xf32> to vector<16xf32>
    %219 = vector.shape_cast %218 : vector<16xf32> to vector<1x16xf32>
    %cst_185 = arith.constant 8.000000e+00 : f32
    %220 = vector.broadcast %cst_185 : f32 to vector<1x16xf32>
    %221 = arith.divf %219, %220 : vector<1x16xf32>
    %cst_186 = arith.constant 9.99999974E-6 : f32
    %222 = vector.broadcast %cst_186 : f32 to vector<1x16xf32>
    %223 = arith.addf %221, %222 : vector<1x16xf32>
    %224 = math.rsqrt %223 : vector<1x16xf32>
    %225 = arith.mulf %209, %224 : vector<1x16xf32>
    %226 = arith.mulf %214, %225 : vector<1x16xf32>
    %227 = arith.subf %210, %226 : vector<1x16xf32>
    %228 = vector.broadcast %225 : vector<1x16xf32> to vector<8x16xf32>
    %229 = arith.mulf %208, %228 : vector<8x16xf32>
    %230 = vector.broadcast %227 : vector<1x16xf32> to vector<8x16xf32>
    %231 = arith.addf %229, %230 : vector<8x16xf32>
    %cst_187 = arith.constant 0.000000e+00 : f32
    %232 = vector.broadcast %cst_187 : f32 to vector<8x16xf32>
    %233 = arith.maximumf %231, %232 : vector<8x16xf32>
    %c0_188 = arith.constant 0 : index
    %c0_189 = arith.constant 0 : index
    %234 = vector.load %arg9[%c0_188, %c0_189] : memref<8x16xf32, #tpu.memory_space<vmem>>, vector<8x16xf32>
    tpu.vector_store %arg9[%c0_188, %c0_189], %233 {strides = array<i32>} : memref<8x16xf32, #tpu.memory_space<vmem>>, vector<8x16xf32>,
    return
  }
  func.func @transform_2(%arg0: i32, %arg1: memref<8xi32, #tpu.memory_space<smem>>, %arg2: memref<8xi32, #tpu.memory_space<smem>>) -> (i32, i32) {
    %c0_i32 = arith.constant 0 : i32
    %c0_i32_0 = arith.constant 0 : i32
    %c0_i32_1 = arith.constant 0 : i32
    return %c0_i32, %c0_i32_0 : i32, i32
  }
  func.func @transform_3(%arg0: i32, %arg1: memref<8xi32, #tpu.memory_space<smem>>, %arg2: memref<8xi32, #tpu.memory_space<smem>>) -> (i32, i32) {
    %c0_i32 = arith.constant 0 : i32
    %c0_i32_0 = arith.constant 0 : i32
    %c0_i32_1 = arith.constant 0 : i32
    return %c0_i32, %c0_i32_0 : i32, i32
  }
  func.func @transform_4(%arg0: i32, %arg1: memref<8xi32, #tpu.memory_space<smem>>, %arg2: memref<8xi32, #tpu.memory_space<smem>>) -> (i32, i32) {
    %c0_i32 = arith.constant 0 : i32
    %c0_i32_0 = arith.constant 0 : i32
    %c0_i32_1 = arith.constant 0 : i32
    return %c0_i32, %c0_i32_0 : i32, i32
  }
  func.func @transform_5(%arg0: i32, %arg1: memref<8xi32, #tpu.memory_space<smem>>, %arg2: memref<8xi32, #tpu.memory_space<smem>>) -> (i32, i32) {
    %c0_i32 = arith.constant 0 : i32
    %c0_i32_0 = arith.constant 0 : i32
    %c0_i32_1 = arith.constant 0 : i32
    return %c0_i32, %c0_i32_0 : i32, i32
  }
  func.func @transform_6(%arg0: i32, %arg1: memref<8xi32, #tpu.memory_space<smem>>, %arg2: memref<8xi32, #tpu.memory_space<smem>>) -> (i32, i32) {
    %c0_i32 = arith.constant 0 : i32
    %c0_i32_0 = arith.constant 0 : i32
    %c0_i32_1 = arith.constant 0 : i32
    return %c0_i32, %c0_i32_0 : i32, i32
  }
}

</mosaic_0001>

<llo_original>
// kernel: tpu_custom_call.1
$region0: #{tpu_custom_call.1}
  #allocation0 [shape = 'u32[]', space=smem, size = 0x4, offset = 0x4, fixed_abs, tag = 'smem constant byte address 0x4 - core index']
  #allocation1 [shape = 'u32[72,128]{1,0:T(1,128)}', space=vmem, size = 0x9000, scoped, tag = 'internal scratch']
  #allocation2 [shape = 'f32[8,16]{1,0:T(8,128)}', space=vmem, size = 0x1000, scoped, tag = 'scratch operand']
  #allocation3 [shape = 'f32[8,16]{1,0:T(8,128)}', space=vmem, size = 0x1000, scoped, tag = 'scratch operand']
  #allocation4 [shape = 's32[8]{0}', space=sflag, size = 0x20, scoped, tag = 'scratch operand']
  #allocation5 [shape = 's32[8]{0}', space=sflag, size = 0x20, scoped, tag = 'scratch operand']
  #allocation6 [shape = 's32[1]{0}', space=sflag, size = 0x4, scoped, tag = 'scoped memory for tpu_custom_call.1']
  #allocation7 [shape = 'u8[512]{0}', space=smem, size = 0x200, scoped, tag = 'prefetched SMEM operand 0']
  #allocation8 [shape = 'u8[512]{0}', space=smem, size = 0x200, scoped, tag = 'prefetched SMEM operand 1']
  #allocation11 [shape = 's32[]', space=sflag, size = 0x4, offset = 0, fixed_abs, tag = 'sflag constant byte address 0x0 - dummy sync flag']
  #allocation12 [shape = 's32[]', space=sflag, size = 0x4, offset = 0, fixed_abs, tag = 'sflag constant byte address 0x0 - dummy sync flag']
  #allocation13 [shape = 's32[]', space=sflag, size = 0x4, offset = 0, fixed_abs, tag = 'sflag constant byte address 0x0 - dummy sync flag']
  #allocation14 [shape = 's32[]', space=sflag, size = 0x4, offset = 0, fixed_abs, tag = 'sflag constant byte address 0x0 - dummy sync flag']
  #allocation15 [shape = 's32[]', space=sflag, size = 0x4, offset = 0, fixed_abs, tag = 'sflag constant byte address 0x0 - dummy sync flag']
  #allocation16 [shape = 's32[]', space=sflag, size = 0x4, offset = 0, fixed_abs, tag = 'sflag constant byte address 0x0 - dummy sync flag']
  #allocation17 [shape = 's32[]', space=sflag, size = 0x4, offset = 0, fixed_abs, tag = 'sflag constant byte address 0x0 - dummy sync flag']
  #allocation18 [shape = 's32[]', space=sflag, size = 0x4, offset = 0, fixed_abs, tag = 'sflag constant byte address 0x0 - dummy sync flag']
  #allocation19 [shape = 's32[]', space=sflag, size = 0x4, offset = 0, fixed_abs, tag = 'sflag constant byte address 0x0 - dummy sync flag']
  #allocation20 [shape = 's32[]', space=sflag, size = 0x4, offset = 0, fixed_abs, tag = 'sflag constant byte address 0x0 - dummy sync flag']
  #allocation21 [shape = 's32[]', space=sflag, size = 0x4, offset = 0, fixed_abs, tag = 'sflag constant byte address 0x0 - dummy sync flag']
  #allocation22 [shape = 's32[]', space=sflag, size = 0x4, offset = 0, fixed_abs, tag = 'sflag constant byte address 0x0 - dummy sync flag']
  #allocation23 [shape = 's32[]', space=sflag, size = 0x4, offset = 0, fixed_abs, tag = 'sflag constant byte address 0x0 - dummy sync flag']
  #allocation24 [shape = 's32[]', space=sflag, size = 0x4, offset = 0, fixed_abs, tag = 'sflag constant byte address 0x0 - dummy sync flag']
  #allocation25 [shape = 's32[]', space=sflag, size = 0x4, offset = 0, fixed_abs, tag = 'sflag constant byte address 0x0 - dummy sync flag']
  #allocation26 [shape = 's32[]', space=sflag, size = 0x4, offset = 0, fixed_abs, tag = 'sflag constant byte address 0x0 - dummy sync flag']
  %s0 = inlined_call_operand.vmem [shape: s32[8], index: 0, kind: input, shape index: {}]
  %s1 = inlined_call_operand.vmem [shape: s32[8], index: 1, kind: input, shape index: {}]
  %s2 = inlined_call_operand.vmem [shape: f32[101,16], index: 2, kind: input, shape index: {}]
  %s3 = inlined_call_operand.vmem [shape: f32[51,16], index: 3, kind: input, shape index: {}]
  %s4 = inlined_call_operand.vmem [shape: bf16[32,64], index: 4, kind: input, shape index: {}]
  %s5 = inlined_call_operand.vmem [shape: bf16[64,32], index: 5, kind: input, shape index: {}]
  %s6 = inlined_call_operand.vmem [shape: bf16[32,16], index: 6, kind: input, shape index: {}]
  %s7 = inlined_call_operand.vmem [shape: f32[6,64], index: 7, kind: input, shape index: {}]
  %s8 = inlined_call_operand.hbm [shape: f32[8,16], index: 8, kind: output, shape index: {}]
  %s9 = sld [smem:[#allocation0]]
  $region506: #{tpu_custom_call.1} parent=0
    _
  %s11 = ssub.s32 1, %s9
  %s12 = scalar_select 0, %s11, %s9
  %s14 = sshll.u32 %s0, 4
  %s15 = int_to_ptr.vmem [resolvable:$true] %s14
  %17 = dma.vmem_to_smem %s15, 16, [#allocation7], [#allocation6]
  %s19 = sshll.u32 %s1, 4
  %s20 = int_to_ptr.vmem [resolvable:$true] %s19
  %22 = dma.vmem_to_smem %s20, 16, [#allocation8], [#allocation6]
  %24 = dma.done [#allocation6], 32
  %25 = sfence
  $region1: #{tpu_custom_call.1} parent=0
    #allocation9 [shape = 'u8[4096]{0}', space=vmem, size = 0x1000, scoped, tag = 'output window, operand 0, single buffered']
    #allocation10 [shape = 's32[1]{0}', space=sflag, size = 0x4, scoped, tag = 'scoped memory for tpu_custom_call.1']
    %26 = vsyncpa [#allocation10], 0
    // Predicated region
    $region2: #{tpu_custom_call.1} parent=1 // pred_check
      _
    $region3: #{tpu_custom_call.1} parent=1 // pred_check_branch
      %28 = sbr.rel (0) target = $region5
    $region4: #{tpu_custom_call.1} parent=1 // pred_region
      _
    $region5: #{tpu_custom_call.1} parent=1 // pred_fallthru
      _
    // Predicated region
    $region6: #{tpu_custom_call.1} parent=1 // pred_check
      _
    $region7: #{tpu_custom_call.1} parent=1 // pred_check_branch
      %30 = sbr.rel (0) target = $region9
    $region8: #{tpu_custom_call.1} parent=1 // pred_region
      _
    $region9: #{tpu_custom_call.1} parent=1 // pred_fallthru
      _
    // Predicated region
    $region10: #{tpu_custom_call.1} parent=1 // pred_check
      _
    $region11: #{tpu_custom_call.1} parent=1 // pred_check_branch
      %32 = sbr.rel (0) target = $region13
    $region12: #{tpu_custom_call.1} parent=1 // pred_region
      _
    $region13: #{tpu_custom_call.1} parent=1 // pred_fallthru
      _
    // Predicated region
    $region14: #{tpu_custom_call.1} parent=1 // pred_check
      _
    $region15: #{tpu_custom_call.1} parent=1 // pred_check_branch
      %34 = sbr.rel (0) target = $region17
    $region16: #{tpu_custom_call.1} parent=1 // pred_region
      _
    $region17: #{tpu_custom_call.1} parent=1 // pred_fallthru
      _
    %s36 = sld [smem:[#allocation7]]
    %s37 = scalar_lea.vmem %s2, %s36
    // Predicated region
    $region18: #{tpu_custom_call.1} parent=1 // pred_check
      _
    $region19: #{tpu_custom_call.1} parent=1 // pred_check_branch
      %39 = sbr.rel target = $region21
    $region20: #{tpu_custom_call.1} parent=1 // pred_region
      // Predicated region
      $region33: #{tpu_custom_call.1} parent=20 // pred_check
        _
      $region34: #{tpu_custom_call.1} parent=20 // pred_check_branch
        %55 = sbr.rel (0) target = $region36
      $region35: #{tpu_custom_call.1} parent=20 // pred_region
        %s57 = ssub.s32 2, 1
        loop: start=0, step=1, limit=1
        $region37: #{tpu_custom_call.1} parent=35 // loop_pre_header
          _
        $region38: #{tpu_custom_call.1} parent=35 // loop_header
          %s59 = sphi 0, %s63
          %p60 = scmp.ge.s32.totalorder %s59, 1
          %s64 = sphi %s37, %s37
          %s65 = sphi [#allocation2], [#allocation2]
        $region39: #{tpu_custom_call.1} parent=35 // loop_header_branch
          %62 = sbr.rel (%p60) target = $region43
        $region40: #{tpu_custom_call.1} parent=35 // loop_body
          %v66 = vld [vmem:[%s64] sm:%s57]
          %67 = vst [vmem:[%s65] sm:%s57] %v66
        $region41: #{tpu_custom_call.1} parent=35 // loop_footer
          %s63 = sadd.s32 1, %s59
        $region42: #{tpu_custom_call.1} parent=35 // loop_footer_branch
          %58 = sbr.rel target = $region38
        $region43: #{tpu_custom_call.1} parent=35 // loop_exit
          _
      $region36: #{tpu_custom_call.1} parent=20 // pred_fallthru
        _
    $region21: #{tpu_custom_call.1} parent=1 // pred_fallthru
      _
    // Predicated region
    $region22: #{tpu_custom_call.1} parent=1 // pred_check
      _
    $region23: #{tpu_custom_call.1} parent=1 // pred_check_branch
      %41 = sbr.rel (0) target = $region25
    $region24: #{tpu_custom_call.1} parent=1 // pred_region
      %s43 = ssub.s32 2, 1
      loop: start=0, step=1, limit=1
      $region26: #{tpu_custom_call.1} parent=24 // loop_pre_header
        _
      $region27: #{tpu_custom_call.1} parent=24 // loop_header
        %s45 = sphi 0, %s49
        %p46 = scmp.ge.s32.totalorder %s45, 1
        %s50 = sphi %s37, %s37
        %s51 = sphi [#allocation2], [#allocation2]
      $region28: #{tpu_custom_call.1} parent=24 // loop_header_branch
        %48 = sbr.rel (%p46) target = $region32
      $region29: #{tpu_custom_call.1} parent=24 // loop_body
        %v52 = vld [vmem:[%s50] sm:%s43]
        %53 = vst [vmem:[%s51] sm:%s43] %v52
      $region30: #{tpu_custom_call.1} parent=24 // loop_footer
        %s49 = sadd.s32 1, %s45
      $region31: #{tpu_custom_call.1} parent=24 // loop_footer_branch
        %44 = sbr.rel target = $region27
      $region32: #{tpu_custom_call.1} parent=24 // loop_exit
        _
    $region25: #{tpu_custom_call.1} parent=1 // pred_fallthru
      _
    // Predicated region
    $region44: #{tpu_custom_call.1} parent=1 // pred_check
      _
    $region45: #{tpu_custom_call.1} parent=1 // pred_check_branch
      %70 = sbr.rel (0) target = $region47
    $region46: #{tpu_custom_call.1} parent=1 // pred_region
      %71 = vsyncadd [#allocation4], 16
    $region47: #{tpu_custom_call.1} parent=1 // pred_fallthru
      _
    %s72 = sld [smem:[#allocation8]]
    %s73 = scalar_lea.vmem %s3, %s72
    // Predicated region
    $region48: #{tpu_custom_call.1} parent=1 // pred_check
      _
    $region49: #{tpu_custom_call.1} parent=1 // pred_check_branch
      %75 = sbr.rel target = $region51
    $region50: #{tpu_custom_call.1} parent=1 // pred_region
      // Predicated region
      $region63: #{tpu_custom_call.1} parent=50 // pred_check
        _
      $region64: #{tpu_custom_call.1} parent=50 // pred_check_branch
        %91 = sbr.rel (0) target = $region66
      $region65: #{tpu_custom_call.1} parent=50 // pred_region
        %s93 = ssub.s32 2, 1
        loop: start=0, step=1, limit=1
        $region67: #{tpu_custom_call.1} parent=65 // loop_pre_header
          _
        $region68: #{tpu_custom_call.1} parent=65 // loop_header
          %s95 = sphi 0, %s99
          %p96 = scmp.ge.s32.totalorder %s95, 1
          %s100 = sphi %s73, %s73
          %s101 = sphi [#allocation3], [#allocation3]
        $region69: #{tpu_custom_call.1} parent=65 // loop_header_branch
          %98 = sbr.rel (%p96) target = $region73
        $region70: #{tpu_custom_call.1} parent=65 // loop_body
          %v102 = vld [vmem:[%s100] sm:%s93]
          %103 = vst [vmem:[%s101] sm:%s93] %v102
        $region71: #{tpu_custom_call.1} parent=65 // loop_footer
          %s99 = sadd.s32 1, %s95
        $region72: #{tpu_custom_call.1} parent=65 // loop_footer_branch
          %94 = sbr.rel target = $region68
        $region73: #{tpu_custom_call.1} parent=65 // loop_exit
          _
      $region66: #{tpu_custom_call.1} parent=50 // pred_fallthru
        _
    $region51: #{tpu_custom_call.1} parent=1 // pred_fallthru
      _
    // Predicated region
    $region52: #{tpu_custom_call.1} parent=1 // pred_check
      _
    $region53: #{tpu_custom_call.1} parent=1 // pred_check_branch
      %77 = sbr.rel (0) target = $region55
    $region54: #{tpu_custom_call.1} parent=1 // pred_region
      %s79 = ssub.s32 2, 1
      loop: start=0, step=1, limit=1
      $region56: #{tpu_custom_call.1} parent=54 // loop_pre_header
        _
      $region57: #{tpu_custom_call.1} parent=54 // loop_header
        %s81 = sphi 0, %s85
        %p82 = scmp.ge.s32.totalorder %s81, 1
        %s86 = sphi %s73, %s73
        %s87 = sphi [#allocation3], [#allocation3]
      $region58: #{tpu_custom_call.1} parent=54 // loop_header_branch
        %84 = sbr.rel (%p82) target = $region62
      $region59: #{tpu_custom_call.1} parent=54 // loop_body
        %v88 = vld [vmem:[%s86] sm:%s79]
        %89 = vst [vmem:[%s87] sm:%s79] %v88
      $region60: #{tpu_custom_call.1} parent=54 // loop_footer
        %s85 = sadd.s32 1, %s81
      $region61: #{tpu_custom_call.1} parent=54 // loop_footer_branch
        %80 = sbr.rel target = $region57
      $region62: #{tpu_custom_call.1} parent=54 // loop_exit
        _
    $region55: #{tpu_custom_call.1} parent=1 // pred_fallthru
      _
    // Predicated region
    $region74: #{tpu_custom_call.1} parent=1 // pred_check
      _
    $region75: #{tpu_custom_call.1} parent=1 // pred_check_branch
      %106 = sbr.rel (0) target = $region77
    $region76: #{tpu_custom_call.1} parent=1 // pred_region
      %107 = vsyncadd [#allocation5], 16
    $region77: #{tpu_custom_call.1} parent=1 // pred_fallthru
      _
    %s108 = sld [smem:[#allocation7 + $0x1]]
    %s109 = scalar_lea.vmem %s2, %s108
    %s110 = scalar_lea.vmem [#allocation2], 1
    %s111 = scalar_lea.sflag [#allocation4], 1
    // Predicated region
    $region78: #{tpu_custom_call.1} parent=1 // pred_check
      _
    $region79: #{tpu_custom_call.1} parent=1 // pred_check_branch
      %113 = sbr.rel target = $region81
    $region80: #{tpu_custom_call.1} parent=1 // pred_region
      // Predicated region
      $region93: #{tpu_custom_call.1} parent=80 // pred_check
        _
      $region94: #{tpu_custom_call.1} parent=80 // pred_check_branch
        %129 = sbr.rel (0) target = $region96
      $region95: #{tpu_custom_call.1} parent=80 // pred_region
        %s131 = ssub.s32 2, 1
        loop: start=0, step=1, limit=1
        $region97: #{tpu_custom_call.1} parent=95 // loop_pre_header
          _
        $region98: #{tpu_custom_call.1} parent=95 // loop_header
          %s133 = sphi 0, %s137
          %p134 = scmp.ge.s32.totalorder %s133, 1
          %s138 = sphi %s109, %s109
          %s139 = sphi %s110, %s110
        $region99: #{tpu_custom_call.1} parent=95 // loop_header_branch
          %136 = sbr.rel (%p134) target = $region103
        $region100: #{tpu_custom_call.1} parent=95 // loop_body
          %v140 = vld [vmem:[%s138] sm:%s131]
          %141 = vst [vmem:[%s139] sm:%s131] %v140
        $region101: #{tpu_custom_call.1} parent=95 // loop_footer
          %s137 = sadd.s32 1, %s133
        $region102: #{tpu_custom_call.1} parent=95 // loop_footer_branch
          %132 = sbr.rel target = $region98
        $region103: #{tpu_custom_call.1} parent=95 // loop_exit
          _
      $region96: #{tpu_custom_call.1} parent=80 // pred_fallthru
        _
    $region81: #{tpu_custom_call.1} parent=1 // pred_fallthru
      _
    // Predicated region
    $region82: #{tpu_custom_call.1} parent=1 // pred_check
      _
    $region83: #{tpu_custom_call.1} parent=1 // pred_check_branch
      %115 = sbr.rel (0) target = $region85
    $region84: #{tpu_custom_call.1} parent=1 // pred_region
      %s117 = ssub.s32 2, 1
      loop: start=0, step=1, limit=1
      $region86: #{tpu_custom_call.1} parent=84 // loop_pre_header
        _
      $region87: #{tpu_custom_call.1} parent=84 // loop_header
        %s119 = sphi 0, %s123
        %p120 = scmp.ge.s32.totalorder %s119, 1
        %s124 = sphi %s109, %s109
        %s125 = sphi %s110, %s110
      $region88: #{tpu_custom_call.1} parent=84 // loop_header_branch
        %122 = sbr.rel (%p120) target = $region92
      $region89: #{tpu_custom_call.1} parent=84 // loop_body
        %v126 = vld [vmem:[%s124] sm:%s117]
        %127 = vst [vmem:[%s125] sm:%s117] %v126
      $region90: #{tpu_custom_call.1} parent=84 // loop_footer
        %s123 = sadd.s32 1, %s119
      $region91: #{tpu_custom_call.1} parent=84 // loop_footer_branch
        %118 = sbr.rel target = $region87
      $region92: #{tpu_custom_call.1} parent=84 // loop_exit
        _
    $region85: #{tpu_custom_call.1} parent=1 // pred_fallthru
      _
    // Predicated region
    $region104: #{tpu_custom_call.1} parent=1 // pred_check
      _
    $region105: #{tpu_custom_call.1} parent=1 // pred_check_branch
      %144 = sbr.rel (0) target = $region107
    $region106: #{tpu_custom_call.1} parent=1 // pred_region
      %145 = vsyncadd %s111, 16
    $region107: #{tpu_custom_call.1} parent=1 // pred_fallthru
      _
    %s146 = sld [smem:[#allocation8 + $0x1]]
    %s147 = scalar_lea.vmem %s3, %s146
    %s148 = scalar_lea.vmem [#allocation3], 1
    %s149 = scalar_lea.sflag [#allocation5], 1
    // Predicated region
    $region108: #{tpu_custom_call.1} parent=1 // pred_check
      _
    $region109: #{tpu_custom_call.1} parent=1 // pred_check_branch
      %151 = sbr.rel target = $region111
    $region110: #{tpu_custom_call.1} parent=1 // pred_region
      // Predicated region
      $region123: #{tpu_custom_call.1} parent=110 // pred_check
        _
      $region124: #{tpu_custom_call.1} parent=110 // pred_check_branch
        %167 = sbr.rel (0) target = $region126
      $region125: #{tpu_custom_call.1} parent=110 // pred_region
        %s169 = ssub.s32 2, 1
        loop: start=0, step=1, limit=1
        $region127: #{tpu_custom_call.1} parent=125 // loop_pre_header
          _
        $region128: #{tpu_custom_call.1} parent=125 // loop_header
          %s171 = sphi 0, %s175
          %p172 = scmp.ge.s32.totalorder %s171, 1
          %s176 = sphi %s147, %s147
          %s177 = sphi %s148, %s148
        $region129: #{tpu_custom_call.1} parent=125 // loop_header_branch
          %174 = sbr.rel (%p172) target = $region133
        $region130: #{tpu_custom_call.1} parent=125 // loop_body
          %v178 = vld [vmem:[%s176] sm:%s169]
          %179 = vst [vmem:[%s177] sm:%s169] %v178
        $region131: #{tpu_custom_call.1} parent=125 // loop_footer
          %s175 = sadd.s32 1, %s171
        $region132: #{tpu_custom_call.1} parent=125 // loop_footer_branch
          %170 = sbr.rel target = $region128
        $region133: #{tpu_custom_call.1} parent=125 // loop_exit
          _
      $region126: #{tpu_custom_call.1} parent=110 // pred_fallthru
        _
    $region111: #{tpu_custom_call.1} parent=1 // pred_fallthru
      _
    // Predicated region
    $region112: #{tpu_custom_call.1} parent=1 // pred_check
      _
    $region113: #{tpu_custom_call.1} parent=1 // pred_check_branch
      %153 = sbr.rel (0) target = $region115
    $region114: #{tpu_custom_call.1} parent=1 // pred_region
      %s155 = ssub.s32 2, 1
      loop: start=0, step=1, limit=1
      $region116: #{tpu_custom_call.1} parent=114 // loop_pre_header
        _
      $region117: #{tpu_custom_call.1} parent=114 // loop_header
        %s157 = sphi 0, %s161
        %p158 = scmp.ge.s32.totalorder %s157, 1
        %s162 = sphi %s147, %s147
        %s163 = sphi %s148, %s148
      $region118: #{tpu_custom_call.1} parent=114 // loop_header_branch
        %160 = sbr.rel (%p158) target = $region122
      $region119: #{tpu_custom_call.1} parent=114 // loop_body
        %v164 = vld [vmem:[%s162] sm:%s155]
        %165 = vst [vmem:[%s163] sm:%s155] %v164
      $region120: #{tpu_custom_call.1} parent=114 // loop_footer
        %s161 = sadd.s32 1, %s157
      $region121: #{tpu_custom_call.1} parent=114 // loop_footer_branch
        %156 = sbr.rel target = $region117
      $region122: #{tpu_custom_call.1} parent=114 // loop_exit
        _
    $region115: #{tpu_custom_call.1} parent=1 // pred_fallthru
      _
    // Predicated region
    $region134: #{tpu_custom_call.1} parent=1 // pred_check
      _
    $region135: #{tpu_custom_call.1} parent=1 // pred_check_branch
      %182 = sbr.rel (0) target = $region137
    $region136: #{tpu_custom_call.1} parent=1 // pred_region
      %183 = vsyncadd %s149, 16
    $region137: #{tpu_custom_call.1} parent=1 // pred_fallthru
      _
    %s184 = sld [smem:[#allocation7 + $0x2]]
    %s185 = scalar_lea.vmem %s2, %s184
    %s186 = scalar_lea.vmem [#allocation2], 2
    %s187 = scalar_lea.sflag [#allocation4], 2
    // Predicated region
    $region138: #{tpu_custom_call.1} parent=1 // pred_check
      _
    $region139: #{tpu_custom_call.1} parent=1 // pred_check_branch
      %189 = sbr.rel target = $region141
    $region140: #{tpu_custom_call.1} parent=1 // pred_region
      // Predicated region
      $region153: #{tpu_custom_call.1} parent=140 // pred_check
        _
      $region154: #{tpu_custom_call.1} parent=140 // pred_check_branch
        %205 = sbr.rel (0) target = $region156
      $region155: #{tpu_custom_call.1} parent=140 // pred_region
        %s207 = ssub.s32 2, 1
        loop: start=0, step=1, limit=1
        $region157: #{tpu_custom_call.1} parent=155 // loop_pre_header
          _
        $region158: #{tpu_custom_call.1} parent=155 // loop_header
          %s209 = sphi 0, %s213
          %p210 = scmp.ge.s32.totalorder %s209, 1
          %s214 = sphi %s185, %s185
          %s215 = sphi %s186, %s186
        $region159: #{tpu_custom_call.1} parent=155 // loop_header_branch
          %212 = sbr.rel (%p210) target = $region163
        $region160: #{tpu_custom_call.1} parent=155 // loop_body
          %v216 = vld [vmem:[%s214] sm:%s207]
          %217 = vst [vmem:[%s215] sm:%s207] %v216
        $region161: #{tpu_custom_call.1} parent=155 // loop_footer
          %s213 = sadd.s32 1, %s209
        $region162: #{tpu_custom_call.1} parent=155 // loop_footer_branch
          %208 = sbr.rel target = $region158
        $region163: #{tpu_custom_call.1} parent=155 // loop_exit
          _
      $region156: #{tpu_custom_call.1} parent=140 // pred_fallthru
        _
    $region141: #{tpu_custom_call.1} parent=1 // pred_fallthru
      _
    // Predicated region
    $region142: #{tpu_custom_call.1} parent=1 // pred_check
      _
    $region143: #{tpu_custom_call.1} parent=1 // pred_check_branch
      %191 = sbr.rel (0) target = $region145
    $region144: #{tpu_custom_call.1} parent=1 // pred_region
      %s193 = ssub.s32 2, 1
      loop: start=0, step=1, limit=1
      $region146: #{tpu_custom_call.1} parent=144 // loop_pre_header
        _
      $region147: #{tpu_custom_call.1} parent=144 // loop_header
        %s195 = sphi 0, %s199
        %p196 = scmp.ge.s32.totalorder %s195, 1
        %s200 = sphi %s185, %s185
        %s201 = sphi %s186, %s186
      $region148: #{tpu_custom_call.1} parent=144 // loop_header_branch
        %198 = sbr.rel (%p196) target = $region152
      $region149: #{tpu_custom_call.1} parent=144 // loop_body
        %v202 = vld [vmem:[%s200] sm:%s193]
        %203 = vst [vmem:[%s201] sm:%s193] %v202
      $region150: #{tpu_custom_call.1} parent=144 // loop_footer
        %s199 = sadd.s32 1, %s195
      $region151: #{tpu_custom_call.1} parent=144 // loop_footer_branch
        %194 = sbr.rel target = $region147
      $region152: #{tpu_custom_call.1} parent=144 // loop_exit
        _
    $region145: #{tpu_custom_call.1} parent=1 // pred_fallthru
      _
    // Predicated region
    $region164: #{tpu_custom_call.1} parent=1 // pred_check
      _
    $region165: #{tpu_custom_call.1} parent=1 // pred_check_branch
      %220 = sbr.rel (0) target = $region167
    $region166: #{tpu_custom_call.1} parent=1 // pred_region
      %221 = vsyncadd %s187, 16
    $region167: #{tpu_custom_call.1} parent=1 // pred_fallthru
      _
    %s222 = sld [smem:[#allocation8 + $0x2]]
    %s223 = scalar_lea.vmem %s3, %s222
    %s224 = scalar_lea.vmem [#allocation3], 2
    %s225 = scalar_lea.sflag [#allocation5], 2
    // Predicated region
    $region168: #{tpu_custom_call.1} parent=1 // pred_check
      _
    $region169: #{tpu_custom_call.1} parent=1 // pred_check_branch
      %227 = sbr.rel target = $region171
    $region170: #{tpu_custom_call.1} parent=1 // pred_region
      // Predicated region
      $region183: #{tpu_custom_call.1} parent=170 // pred_check
        _
      $region184: #{tpu_custom_call.1} parent=170 // pred_check_branch
        %243 = sbr.rel (0) target = $region186
      $region185: #{tpu_custom_call.1} parent=170 // pred_region
        %s245 = ssub.s32 2, 1
        loop: start=0, step=1, limit=1
        $region187: #{tpu_custom_call.1} parent=185 // loop_pre_header
          _
        $region188: #{tpu_custom_call.1} parent=185 // loop_header
          %s247 = sphi 0, %s251
          %p248 = scmp.ge.s32.totalorder %s247, 1
          %s252 = sphi %s223, %s223
          %s253 = sphi %s224, %s224
        $region189: #{tpu_custom_call.1} parent=185 // loop_header_branch
          %250 = sbr.rel (%p248) target = $region193
        $region190: #{tpu_custom_call.1} parent=185 // loop_body
          %v254 = vld [vmem:[%s252] sm:%s245]
          %255 = vst [vmem:[%s253] sm:%s245] %v254
        $region191: #{tpu_custom_call.1} parent=185 // loop_footer
          %s251 = sadd.s32 1, %s247
        $region192: #{tpu_custom_call.1} parent=185 // loop_footer_branch
          %246 = sbr.rel target = $region188
        $region193: #{tpu_custom_call.1} parent=185 // loop_exit
          _
      $region186: #{tpu_custom_call.1} parent=170 // pred_fallthru
        _
    $region171: #{tpu_custom_call.1} parent=1 // pred_fallthru
      _
    // Predicated region
    $region172: #{tpu_custom_call.1} parent=1 // pred_check
      _
    $region173: #{tpu_custom_call.1} parent=1 // pred_check_branch
      %229 = sbr.rel (0) target = $region175
    $region174: #{tpu_custom_call.1} parent=1 // pred_region
      %s231 = ssub.s32 2, 1
      loop: start=0, step=1, limit=1
      $region176: #{tpu_custom_call.1} parent=174 // loop_pre_header
        _
      $region177: #{tpu_custom_call.1} parent=174 // loop_header
        %s233 = sphi 0, %s237
        %p234 = scmp.ge.s32.totalorder %s233, 1
        %s238 = sphi %s223, %s223
        %s239 = sphi %s224, %s224
      $region178: #{tpu_custom_call.1} parent=174 // loop_header_branch
        %236 = sbr.rel (%p234) target = $region182
      $region179: #{tpu_custom_call.1} parent=174 // loop_body
        %v240 = vld [vmem:[%s238] sm:%s231]
        %241 = vst [vmem:[%s239] sm:%s231] %v240
      $region180: #{tpu_custom_call.1} parent=174 // loop_footer
        %s237 = sadd.s32 1, %s233
      $region181: #{tpu_custom_call.1} parent=174 // loop_footer_branch
        %232 = sbr.rel target = $region177
      $region182: #{tpu_custom_call.1} parent=174 // loop_exit
        _
    $region175: #{tpu_custom_call.1} parent=1 // pred_fallthru
      _
    // Predicated region
    $region194: #{tpu_custom_call.1} parent=1 // pred_check
      _
    $region195: #{tpu_custom_call.1} parent=1 // pred_check_branch
      %258 = sbr.rel (0) target = $region197
    $region196: #{tpu_custom_call.1} parent=1 // pred_region
      %259 = vsyncadd %s225, 16
    $region197: #{tpu_custom_call.1} parent=1 // pred_fallthru
      _
    %s260 = sld [smem:[#allocation7 + $0x3]]
    %s261 = scalar_lea.vmem %s2, %s260
    %s262 = scalar_lea.vmem [#allocation2], 3
    %s263 = scalar_lea.sflag [#allocation4], 3
    // Predicated region
    $region198: #{tpu_custom_call.1} parent=1 // pred_check
      _
    $region199: #{tpu_custom_call.1} parent=1 // pred_check_branch
      %265 = sbr.rel target = $region201
    $region200: #{tpu_custom_call.1} parent=1 // pred_region
      // Predicated region
      $region213: #{tpu_custom_call.1} parent=200 // pred_check
        _
      $region214: #{tpu_custom_call.1} parent=200 // pred_check_branch
        %281 = sbr.rel (0) target = $region216
      $region215: #{tpu_custom_call.1} parent=200 // pred_region
        %s283 = ssub.s32 2, 1
        loop: start=0, step=1, limit=1
        $region217: #{tpu_custom_call.1} parent=215 // loop_pre_header
          _
        $region218: #{tpu_custom_call.1} parent=215 // loop_header
          %s285 = sphi 0, %s289
          %p286 = scmp.ge.s32.totalorder %s285, 1
          %s290 = sphi %s261, %s261
          %s291 = sphi %s262, %s262
        $region219: #{tpu_custom_call.1} parent=215 // loop_header_branch
          %288 = sbr.rel (%p286) target = $region223
        $region220: #{tpu_custom_call.1} parent=215 // loop_body
          %v292 = vld [vmem:[%s290] sm:%s283]
          %293 = vst [vmem:[%s291] sm:%s283] %v292
        $region221: #{tpu_custom_call.1} parent=215 // loop_footer
          %s289 = sadd.s32 1, %s285
        $region222: #{tpu_custom_call.1} parent=215 // loop_footer_branch
          %284 = sbr.rel target = $region218
        $region223: #{tpu_custom_call.1} parent=215 // loop_exit
          _
      $region216: #{tpu_custom_call.1} parent=200 // pred_fallthru
        _
    $region201: #{tpu_custom_call.1} parent=1 // pred_fallthru
      _
    // Predicated region
    $region202: #{tpu_custom_call.1} parent=1 // pred_check
      _
    $region203: #{tpu_custom_call.1} parent=1 // pred_check_branch
      %267 = sbr.rel (0) target = $region205
    $region204: #{tpu_custom_call.1} parent=1 // pred_region
      %s269 = ssub.s32 2, 1
      loop: start=0, step=1, limit=1
      $region206: #{tpu_custom_call.1} parent=204 // loop_pre_header
        _
      $region207: #{tpu_custom_call.1} parent=204 // loop_header
        %s271 = sphi 0, %s275
        %p272 = scmp.ge.s32.totalorder %s271, 1
        %s276 = sphi %s261, %s261
        %s277 = sphi %s262, %s262
      $region208: #{tpu_custom_call.1} parent=204 // loop_header_branch
        %274 = sbr.rel (%p272) target = $region212
      $region209: #{tpu_custom_call.1} parent=204 // loop_body
        %v278 = vld [vmem:[%s276] sm:%s269]
        %279 = vst [vmem:[%s277] sm:%s269] %v278
      $region210: #{tpu_custom_call.1} parent=204 // loop_footer
        %s275 = sadd.s32 1, %s271
      $region211: #{tpu_custom_call.1} parent=204 // loop_footer_branch
        %270 = sbr.rel target = $region207
      $region212: #{tpu_custom_call.1} parent=204 // loop_exit
        _
    $region205: #{tpu_custom_call.1} parent=1 // pred_fallthru
      _
    // Predicated region
    $region224: #{tpu_custom_call.1} parent=1 // pred_check
      _
    $region225: #{tpu_custom_call.1} parent=1 // pred_check_branch
      %296 = sbr.rel (0) target = $region227
    $region226: #{tpu_custom_call.1} parent=1 // pred_region
      %297 = vsyncadd %s263, 16
    $region227: #{tpu_custom_call.1} parent=1 // pred_fallthru
      _
    %s298 = sld [smem:[#allocation8 + $0x3]]
    %s299 = scalar_lea.vmem %s3, %s298
    %s300 = scalar_lea.vmem [#allocation3], 3
    %s301 = scalar_lea.sflag [#allocation5], 3
    // Predicated region
    $region228: #{tpu_custom_call.1} parent=1 // pred_check
      _
    $region229: #{tpu_custom_call.1} parent=1 // pred_check_branch
      %303 = sbr.rel target = $region231
    $region230: #{tpu_custom_call.1} parent=1 // pred_region
      // Predicated region
      $region243: #{tpu_custom_call.1} parent=230 // pred_check
        _
      $region244: #{tpu_custom_call.1} parent=230 // pred_check_branch
        %319 = sbr.rel (0) target = $region246
      $region245: #{tpu_custom_call.1} parent=230 // pred_region
        %s321 = ssub.s32 2, 1
        loop: start=0, step=1, limit=1
        $region247: #{tpu_custom_call.1} parent=245 // loop_pre_header
          _
        $region248: #{tpu_custom_call.1} parent=245 // loop_header
          %s323 = sphi 0, %s327
          %p324 = scmp.ge.s32.totalorder %s323, 1
          %s328 = sphi %s299, %s299
          %s329 = sphi %s300, %s300
        $region249: #{tpu_custom_call.1} parent=245 // loop_header_branch
          %326 = sbr.rel (%p324) target = $region253
        $region250: #{tpu_custom_call.1} parent=245 // loop_body
          %v330 = vld [vmem:[%s328] sm:%s321]
          %331 = vst [vmem:[%s329] sm:%s321] %v330
        $region251: #{tpu_custom_call.1} parent=245 // loop_footer
          %s327 = sadd.s32 1, %s323
        $region252: #{tpu_custom_call.1} parent=245 // loop_footer_branch
          %322 = sbr.rel target = $region248
        $region253: #{tpu_custom_call.1} parent=245 // loop_exit
          _
      $region246: #{tpu_custom_call.1} parent=230 // pred_fallthru
        _
    $region231: #{tpu_custom_call.1} parent=1 // pred_fallthru
      _
    // Predicated region
    $region232: #{tpu_custom_call.1} parent=1 // pred_check
      _
    $region233: #{tpu_custom_call.1} parent=1 // pred_check_branch
      %305 = sbr.rel (0) target = $region235
    $region234: #{tpu_custom_call.1} parent=1 // pred_region
      %s307 = ssub.s32 2, 1
      loop: start=0, step=1, limit=1
      $region236: #{tpu_custom_call.1} parent=234 // loop_pre_header
        _
      $region237: #{tpu_custom_call.1} parent=234 // loop_header
        %s309 = sphi 0, %s313
        %p310 = scmp.ge.s32.totalorder %s309, 1
        %s314 = sphi %s299, %s299
        %s315 = sphi %s300, %s300
      $region238: #{tpu_custom_call.1} parent=234 // loop_header_branch
        %312 = sbr.rel (%p310) target = $region242
      $region239: #{tpu_custom_call.1} parent=234 // loop_body
        %v316 = vld [vmem:[%s314] sm:%s307]
        %317 = vst [vmem:[%s315] sm:%s307] %v316
      $region240: #{tpu_custom_call.1} parent=234 // loop_footer
        %s313 = sadd.s32 1, %s309
      $region241: #{tpu_custom_call.1} parent=234 // loop_footer_branch
        %308 = sbr.rel target = $region237
      $region242: #{tpu_custom_call.1} parent=234 // loop_exit
        _
    $region235: #{tpu_custom_call.1} parent=1 // pred_fallthru
      _
    // Predicated region
    $region254: #{tpu_custom_call.1} parent=1 // pred_check
      _
    $region255: #{tpu_custom_call.1} parent=1 // pred_check_branch
      %334 = sbr.rel (0) target = $region257
    $region256: #{tpu_custom_call.1} parent=1 // pred_region
      %335 = vsyncadd %s301, 16
    $region257: #{tpu_custom_call.1} parent=1 // pred_fallthru
      _
    %s336 = sld [smem:[#allocation7 + $0x4]]
    %s337 = scalar_lea.vmem %s2, %s336
    %s338 = scalar_lea.vmem [#allocation2], 4
    %s339 = scalar_lea.sflag [#allocation4], 4
    // Predicated region
    $region258: #{tpu_custom_call.1} parent=1 // pred_check
      _
    $region259: #{tpu_custom_call.1} parent=1 // pred_check_branch
      %341 = sbr.rel target = $region261
    $region260: #{tpu_custom_call.1} parent=1 // pred_region
      // Predicated region
      $region273: #{tpu_custom_call.1} parent=260 // pred_check
        _
      $region274: #{tpu_custom_call.1} parent=260 // pred_check_branch
        %357 = sbr.rel (0) target = $region276
      $region275: #{tpu_custom_call.1} parent=260 // pred_region
        %s359 = ssub.s32 2, 1
        loop: start=0, step=1, limit=1
        $region277: #{tpu_custom_call.1} parent=275 // loop_pre_header
          _
        $region278: #{tpu_custom_call.1} parent=275 // loop_header
          %s361 = sphi 0, %s365
          %p362 = scmp.ge.s32.totalorder %s361, 1
          %s366 = sphi %s337, %s337
          %s367 = sphi %s338, %s338
        $region279: #{tpu_custom_call.1} parent=275 // loop_header_branch
          %364 = sbr.rel (%p362) target = $region283
        $region280: #{tpu_custom_call.1} parent=275 // loop_body
          %v368 = vld [vmem:[%s366] sm:%s359]
          %369 = vst [vmem:[%s367] sm:%s359] %v368
        $region281: #{tpu_custom_call.1} parent=275 // loop_footer
          %s365 = sadd.s32 1, %s361
        $region282: #{tpu_custom_call.1} parent=275 // loop_footer_branch
          %360 = sbr.rel target = $region278
        $region283: #{tpu_custom_call.1} parent=275 // loop_exit
          _
      $region276: #{tpu_custom_call.1} parent=260 // pred_fallthru
        _
    $region261: #{tpu_custom_call.1} parent=1 // pred_fallthru
      _
    // Predicated region
    $region262: #{tpu_custom_call.1} parent=1 // pred_check
      _
    $region263: #{tpu_custom_call.1} parent=1 // pred_check_branch
      %343 = sbr.rel (0) target = $region265
    $region264: #{tpu_custom_call.1} parent=1 // pred_region
      %s345 = ssub.s32 2, 1
      loop: start=0, step=1, limit=1
      $region266: #{tpu_custom_call.1} parent=264 // loop_pre_header
        _
      $region267: #{tpu_custom_call.1} parent=264 // loop_header
        %s347 = sphi 0, %s351
        %p348 = scmp.ge.s32.totalorder %s347, 1
        %s352 = sphi %s337, %s337
        %s353 = sphi %s338, %s338
      $region268: #{tpu_custom_call.1} parent=264 // loop_header_branch
        %350 = sbr.rel (%p348) target = $region272
      $region269: #{tpu_custom_call.1} parent=264 // loop_body
        %v354 = vld [vmem:[%s352] sm:%s345]
        %355 = vst [vmem:[%s353] sm:%s345] %v354
      $region270: #{tpu_custom_call.1} parent=264 // loop_footer
        %s351 = sadd.s32 1, %s347
      $region271: #{tpu_custom_call.1} parent=264 // loop_footer_branch
        %346 = sbr.rel target = $region267
      $region272: #{tpu_custom_call.1} parent=264 // loop_exit
        _
    $region265: #{tpu_custom_call.1} parent=1 // pred_fallthru
      _
    // Predicated region
    $region284: #{tpu_custom_call.1} parent=1 // pred_check
      _
    $region285: #{tpu_custom_call.1} parent=1 // pred_check_branch
      %372 = sbr.rel (0) target = $region287
    $region286: #{tpu_custom_call.1} parent=1 // pred_region
      %373 = vsyncadd %s339, 16
    $region287: #{tpu_custom_call.1} parent=1 // pred_fallthru
      _
    %s374 = sld [smem:[#allocation8 + $0x4]]
    %s375 = scalar_lea.vmem %s3, %s374
    %s376 = scalar_lea.vmem [#allocation3], 4
    %s377 = scalar_lea.sflag [#allocation5], 4
    // Predicated region
    $region288: #{tpu_custom_call.1} parent=1 // pred_check
      _
    $region289: #{tpu_custom_call.1} parent=1 // pred_check_branch
      %379 = sbr.rel target = $region291
    $region290: #{tpu_custom_call.1} parent=1 // pred_region
      // Predicated region
      $region303: #{tpu_custom_call.1} parent=290 // pred_check
        _
      $region304: #{tpu_custom_call.1} parent=290 // pred_check_branch
        %395 = sbr.rel (0) target = $region306
      $region305: #{tpu_custom_call.1} parent=290 // pred_region
        %s397 = ssub.s32 2, 1
        loop: start=0, step=1, limit=1
        $region307: #{tpu_custom_call.1} parent=305 // loop_pre_header
          _
        $region308: #{tpu_custom_call.1} parent=305 // loop_header
          %s399 = sphi 0, %s403
          %p400 = scmp.ge.s32.totalorder %s399, 1
          %s404 = sphi %s375, %s375
          %s405 = sphi %s376, %s376
        $region309: #{tpu_custom_call.1} parent=305 // loop_header_branch
          %402 = sbr.rel (%p400) target = $region313
        $region310: #{tpu_custom_call.1} parent=305 // loop_body
          %v406 = vld [vmem:[%s404] sm:%s397]
          %407 = vst [vmem:[%s405] sm:%s397] %v406
        $region311: #{tpu_custom_call.1} parent=305 // loop_footer
          %s403 = sadd.s32 1, %s399
        $region312: #{tpu_custom_call.1} parent=305 // loop_footer_branch
          %398 = sbr.rel target = $region308
        $region313: #{tpu_custom_call.1} parent=305 // loop_exit
          _
      $region306: #{tpu_custom_call.1} parent=290 // pred_fallthru
        _
    $region291: #{tpu_custom_call.1} parent=1 // pred_fallthru
      _
    // Predicated region
    $region292: #{tpu_custom_call.1} parent=1 // pred_check
      _
    $region293: #{tpu_custom_call.1} parent=1 // pred_check_branch
      %381 = sbr.rel (0) target = $region295
    $region294: #{tpu_custom_call.1} parent=1 // pred_region
      %s383 = ssub.s32 2, 1
      loop: start=0, step=1, limit=1
      $region296: #{tpu_custom_call.1} parent=294 // loop_pre_header
        _
      $region297: #{tpu_custom_call.1} parent=294 // loop_header
        %s385 = sphi 0, %s389
        %p386 = scmp.ge.s32.totalorder %s385, 1
        %s390 = sphi %s375, %s375
        %s391 = sphi %s376, %s376
      $region298: #{tpu_custom_call.1} parent=294 // loop_header_branch
        %388 = sbr.rel (%p386) target = $region302
      $region299: #{tpu_custom_call.1} parent=294 // loop_body
        %v392 = vld [vmem:[%s390] sm:%s383]
        %393 = vst [vmem:[%s391] sm:%s383] %v392
      $region300: #{tpu_custom_call.1} parent=294 // loop_footer
        %s389 = sadd.s32 1, %s385
      $region301: #{tpu_custom_call.1} parent=294 // loop_footer_branch
        %384 = sbr.rel target = $region297
      $region302: #{tpu_custom_call.1} parent=294 // loop_exit
        _
    $region295: #{tpu_custom_call.1} parent=1 // pred_fallthru
      _
    // Predicated region
    $region314: #{tpu_custom_call.1} parent=1 // pred_check
      _
    $region315: #{tpu_custom_call.1} parent=1 // pred_check_branch
      %410 = sbr.rel (0) target = $region317
    $region316: #{tpu_custom_call.1} parent=1 // pred_region
      %411 = vsyncadd %s377, 16
    $region317: #{tpu_custom_call.1} parent=1 // pred_fallthru
      _
    %s412 = sld [smem:[#allocation7 + $0x5]]
    %s413 = scalar_lea.vmem %s2, %s412
    %s414 = scalar_lea.vmem [#allocation2], 5
    %s415 = scalar_lea.sflag [#allocation4], 5
    // Predicated region
    $region318: #{tpu_custom_call.1} parent=1 // pred_check
      _
    $region319: #{tpu_custom_call.1} parent=1 // pred_check_branch
      %417 = sbr.rel target = $region321
    $region320: #{tpu_custom_call.1} parent=1 // pred_region
      // Predicated region
      $region333: #{tpu_custom_call.1} parent=320 // pred_check
        _
      $region334: #{tpu_custom_call.1} parent=320 // pred_check_branch
        %433 = sbr.rel (0) target = $region336
      $region335: #{tpu_custom_call.1} parent=320 // pred_region
        %s435 = ssub.s32 2, 1
        loop: start=0, step=1, limit=1
        $region337: #{tpu_custom_call.1} parent=335 // loop_pre_header
          _
        $region338: #{tpu_custom_call.1} parent=335 // loop_header
          %s437 = sphi 0, %s441
          %p438 = scmp.ge.s32.totalorder %s437, 1
          %s442 = sphi %s413, %s413
          %s443 = sphi %s414, %s414
        $region339: #{tpu_custom_call.1} parent=335 // loop_header_branch
          %440 = sbr.rel (%p438) target = $region343
        $region340: #{tpu_custom_call.1} parent=335 // loop_body
          %v444 = vld [vmem:[%s442] sm:%s435]
          %445 = vst [vmem:[%s443] sm:%s435] %v444
        $region341: #{tpu_custom_call.1} parent=335 // loop_footer
          %s441 = sadd.s32 1, %s437
        $region342: #{tpu_custom_call.1} parent=335 // loop_footer_branch
          %436 = sbr.rel target = $region338
        $region343: #{tpu_custom_call.1} parent=335 // loop_exit
          _
      $region336: #{tpu_custom_call.1} parent=320 // pred_fallthru
        _
    $region321: #{tpu_custom_call.1} parent=1 // pred_fallthru
      _
    // Predicated region
    $region322: #{tpu_custom_call.1} parent=1 // pred_check
      _
    $region323: #{tpu_custom_call.1} parent=1 // pred_check_branch
      %419 = sbr.rel (0) target = $region325
    $region324: #{tpu_custom_call.1} parent=1 // pred_region
      %s421 = ssub.s32 2, 1
      loop: start=0, step=1, limit=1
      $region326: #{tpu_custom_call.1} parent=324 // loop_pre_header
        _
      $region327: #{tpu_custom_call.1} parent=324 // loop_header
        %s423 = sphi 0, %s427
        %p424 = scmp.ge.s32.totalorder %s423, 1
        %s428 = sphi %s413, %s413
        %s429 = sphi %s414, %s414
      $region328: #{tpu_custom_call.1} parent=324 // loop_header_branch
        %426 = sbr.rel (%p424) target = $region332
      $region329: #{tpu_custom_call.1} parent=324 // loop_body
        %v430 = vld [vmem:[%s428] sm:%s421]
        %431 = vst [vmem:[%s429] sm:%s421] %v430
      $region330: #{tpu_custom_call.1} parent=324 // loop_footer
        %s427 = sadd.s32 1, %s423
      $region331: #{tpu_custom_call.1} parent=324 // loop_footer_branch
        %422 = sbr.rel target = $region327
      $region332: #{tpu_custom_call.1} parent=324 // loop_exit
        _
    $region325: #{tpu_custom_call.1} parent=1 // pred_fallthru
      _
    // Predicated region
    $region344: #{tpu_custom_call.1} parent=1 // pred_check
      _
    $region345: #{tpu_custom_call.1} parent=1 // pred_check_branch
      %448 = sbr.rel (0) target = $region347
    $region346: #{tpu_custom_call.1} parent=1 // pred_region
      %449 = vsyncadd %s415, 16
    $region347: #{tpu_custom_call.1} parent=1 // pred_fallthru
      _
    %s450 = sld [smem:[#allocation8 + $0x5]]
    %s451 = scalar_lea.vmem %s3, %s450
    %s452 = scalar_lea.vmem [#allocation3], 5
    %s453 = scalar_lea.sflag [#allocation5], 5
    // Predicated region
    $region348: #{tpu_custom_call.1} parent=1 // pred_check
      _
    $region349: #{tpu_custom_call.1} parent=1 // pred_check_branch
      %455 = sbr.rel target = $region351
    $region350: #{tpu_custom_call.1} parent=1 // pred_region
      // Predicated region
      $region363: #{tpu_custom_call.1} parent=350 // pred_check
        _
      $region364: #{tpu_custom_call.1} parent=350 // pred_check_branch
        %471 = sbr.rel (0) target = $region366
      $region365: #{tpu_custom_call.1} parent=350 // pred_region
        %s473 = ssub.s32 2, 1
        loop: start=0, step=1, limit=1
        $region367: #{tpu_custom_call.1} parent=365 // loop_pre_header
          _
        $region368: #{tpu_custom_call.1} parent=365 // loop_header
          %s475 = sphi 0, %s479
          %p476 = scmp.ge.s32.totalorder %s475, 1
          %s480 = sphi %s451, %s451
          %s481 = sphi %s452, %s452
        $region369: #{tpu_custom_call.1} parent=365 // loop_header_branch
          %478 = sbr.rel (%p476) target = $region373
        $region370: #{tpu_custom_call.1} parent=365 // loop_body
          %v482 = vld [vmem:[%s480] sm:%s473]
          %483 = vst [vmem:[%s481] sm:%s473] %v482
        $region371: #{tpu_custom_call.1} parent=365 // loop_footer
          %s479 = sadd.s32 1, %s475
        $region372: #{tpu_custom_call.1} parent=365 // loop_footer_branch
          %474 = sbr.rel target = $region368
        $region373: #{tpu_custom_call.1} parent=365 // loop_exit
          _
      $region366: #{tpu_custom_call.1} parent=350 // pred_fallthru
        _
    $region351: #{tpu_custom_call.1} parent=1 // pred_fallthru
      _
    // Predicated region
    $region352: #{tpu_custom_call.1} parent=1 // pred_check
      _
    $region353: #{tpu_custom_call.1} parent=1 // pred_check_branch
      %457 = sbr.rel (0) target = $region355
    $region354: #{tpu_custom_call.1} parent=1 // pred_region
      %s459 = ssub.s32 2, 1
      loop: start=0, step=1, limit=1
      $region356: #{tpu_custom_call.1} parent=354 // loop_pre_header
        _
      $region357: #{tpu_custom_call.1} parent=354 // loop_header
        %s461 = sphi 0, %s465
        %p462 = scmp.ge.s32.totalorder %s461, 1
        %s466 = sphi %s451, %s451
        %s467 = sphi %s452, %s452
      $region358: #{tpu_custom_call.1} parent=354 // loop_header_branch
        %464 = sbr.rel (%p462) target = $region362
      $region359: #{tpu_custom_call.1} parent=354 // loop_body
        %v468 = vld [vmem:[%s466] sm:%s459]
        %469 = vst [vmem:[%s467] sm:%s459] %v468
      $region360: #{tpu_custom_call.1} parent=354 // loop_footer
        %s465 = sadd.s32 1, %s461
      $region361: #{tpu_custom_call.1} parent=354 // loop_footer_branch
        %460 = sbr.rel target = $region357
      $region362: #{tpu_custom_call.1} parent=354 // loop_exit
        _
    $region355: #{tpu_custom_call.1} parent=1 // pred_fallthru
      _
    // Predicated region
    $region374: #{tpu_custom_call.1} parent=1 // pred_check
      _
    $region375: #{tpu_custom_call.1} parent=1 // pred_check_branch
      %486 = sbr.rel (0) target = $region377
    $region376: #{tpu_custom_call.1} parent=1 // pred_region
      %487 = vsyncadd %s453, 16
    $region377: #{tpu_custom_call.1} parent=1 // pred_fallthru
      _
    %s488 = sld [smem:[#allocation7 + $0x6]]
    %s489 = scalar_lea.vmem %s2, %s488
    %s490 = scalar_lea.vmem [#allocation2], 6
    %s491 = scalar_lea.sflag [#allocation4], 6
    // Predicated region
    $region378: #{tpu_custom_call.1} parent=1 // pred_check
      _
    $region379: #{tpu_custom_call.1} parent=1 // pred_check_branch
      %493 = sbr.rel target = $region381
    $region380: #{tpu_custom_call.1} parent=1 // pred_region
      // Predicated region
      $region393: #{tpu_custom_call.1} parent=380 // pred_check
        _
      $region394: #{tpu_custom_call.1} parent=380 // pred_check_branch
        %509 = sbr.rel (0) target = $region396
      $region395: #{tpu_custom_call.1} parent=380 // pred_region
        %s511 = ssub.s32 2, 1
        loop: start=0, step=1, limit=1
        $region397: #{tpu_custom_call.1} parent=395 // loop_pre_header
          _
        $region398: #{tpu_custom_call.1} parent=395 // loop_header
          %s513 = sphi 0, %s517
          %p514 = scmp.ge.s32.totalorder %s513, 1
          %s518 = sphi %s489, %s489
          %s519 = sphi %s490, %s490
        $region399: #{tpu_custom_call.1} parent=395 // loop_header_branch
          %516 = sbr.rel (%p514) target = $region403
        $region400: #{tpu_custom_call.1} parent=395 // loop_body
          %v520 = vld [vmem:[%s518] sm:%s511]
          %521 = vst [vmem:[%s519] sm:%s511] %v520
        $region401: #{tpu_custom_call.1} parent=395 // loop_footer
          %s517 = sadd.s32 1, %s513
        $region402: #{tpu_custom_call.1} parent=395 // loop_footer_branch
          %512 = sbr.rel target = $region398
        $region403: #{tpu_custom_call.1} parent=395 // loop_exit
          _
      $region396: #{tpu_custom_call.1} parent=380 // pred_fallthru
        _
    $region381: #{tpu_custom_call.1} parent=1 // pred_fallthru
      _
    // Predicated region
    $region382: #{tpu_custom_call.1} parent=1 // pred_check
      _
    $region383: #{tpu_custom_call.1} parent=1 // pred_check_branch
      %495 = sbr.rel (0) target = $region385
    $region384: #{tpu_custom_call.1} parent=1 // pred_region
      %s497 = ssub.s32 2, 1
      loop: start=0, step=1, limit=1
      $region386: #{tpu_custom_call.1} parent=384 // loop_pre_header
        _
      $region387: #{tpu_custom_call.1} parent=384 // loop_header
        %s499 = sphi 0, %s503
        %p500 = scmp.ge.s32.totalorder %s499, 1
        %s504 = sphi %s489, %s489
        %s505 = sphi %s490, %s490
      $region388: #{tpu_custom_call.1} parent=384 // loop_header_branch
        %502 = sbr.rel (%p500) target = $region392
      $region389: #{tpu_custom_call.1} parent=384 // loop_body
        %v506 = vld [vmem:[%s504] sm:%s497]
        %507 = vst [vmem:[%s505] sm:%s497] %v506
      $region390: #{tpu_custom_call.1} parent=384 // loop_footer
        %s503 = sadd.s32 1, %s499
      $region391: #{tpu_custom_call.1} parent=384 // loop_footer_branch
        %498 = sbr.rel target = $region387
      $region392: #{tpu_custom_call.1} parent=384 // loop_exit
        _
    $region385: #{tpu_custom_call.1} parent=1 // pred_fallthru
      _
    // Predicated region
    $region404: #{tpu_custom_call.1} parent=1 // pred_check
      _
    $region405: #{tpu_custom_call.1} parent=1 // pred_check_branch
      %524 = sbr.rel (0) target = $region407
    $region406: #{tpu_custom_call.1} parent=1 // pred_region
      %525 = vsyncadd %s491, 16
    $region407: #{tpu_custom_call.1} parent=1 // pred_fallthru
      _
    %s526 = sld [smem:[#allocation8 + $0x6]]
    %s527 = scalar_lea.vmem %s3, %s526
    %s528 = scalar_lea.vmem [#allocation3], 6
    %s529 = scalar_lea.sflag [#allocation5], 6
    // Predicated region
    $region408: #{tpu_custom_call.1} parent=1 // pred_check
      _
    $region409: #{tpu_custom_call.1} parent=1 // pred_check_branch
      %531 = sbr.rel target = $region411
    $region410: #{tpu_custom_call.1} parent=1 // pred_region
      // Predicated region
      $region423: #{tpu_custom_call.1} parent=410 // pred_check
        _
      $region424: #{tpu_custom_call.1} parent=410 // pred_check_branch
        %547 = sbr.rel (0) target = $region426
      $region425: #{tpu_custom_call.1} parent=410 // pred_region
        %s549 = ssub.s32 2, 1
        loop: start=0, step=1, limit=1
        $region427: #{tpu_custom_call.1} parent=425 // loop_pre_header
          _
        $region428: #{tpu_custom_call.1} parent=425 // loop_header
          %s551 = sphi 0, %s555
          %p552 = scmp.ge.s32.totalorder %s551, 1
          %s556 = sphi %s527, %s527
          %s557 = sphi %s528, %s528
        $region429: #{tpu_custom_call.1} parent=425 // loop_header_branch
          %554 = sbr.rel (%p552) target = $region433
        $region430: #{tpu_custom_call.1} parent=425 // loop_body
          %v558 = vld [vmem:[%s556] sm:%s549]
          %559 = vst [vmem:[%s557] sm:%s549] %v558
        $region431: #{tpu_custom_call.1} parent=425 // loop_footer
          %s555 = sadd.s32 1, %s551
        $region432: #{tpu_custom_call.1} parent=425 // loop_footer_branch
          %550 = sbr.rel target = $region428
        $region433: #{tpu_custom_call.1} parent=425 // loop_exit
          _
      $region426: #{tpu_custom_call.1} parent=410 // pred_fallthru
        _
    $region411: #{tpu_custom_call.1} parent=1 // pred_fallthru
      _
    // Predicated region
    $region412: #{tpu_custom_call.1} parent=1 // pred_check
      _
    $region413: #{tpu_custom_call.1} parent=1 // pred_check_branch
      %533 = sbr.rel (0) target = $region415
    $region414: #{tpu_custom_call.1} parent=1 // pred_region
      %s535 = ssub.s32 2, 1
      loop: start=0, step=1, limit=1
      $region416: #{tpu_custom_call.1} parent=414 // loop_pre_header
        _
      $region417: #{tpu_custom_call.1} parent=414 // loop_header
        %s537 = sphi 0, %s541
        %p538 = scmp.ge.s32.totalorder %s537, 1
        %s542 = sphi %s527, %s527
        %s543 = sphi %s528, %s528
      $region418: #{tpu_custom_call.1} parent=414 // loop_header_branch
        %540 = sbr.rel (%p538) target = $region422
      $region419: #{tpu_custom_call.1} parent=414 // loop_body
        %v544 = vld [vmem:[%s542] sm:%s535]
        %545 = vst [vmem:[%s543] sm:%s535] %v544
      $region420: #{tpu_custom_call.1} parent=414 // loop_footer
        %s541 = sadd.s32 1, %s537
      $region421: #{tpu_custom_call.1} parent=414 // loop_footer_branch
        %536 = sbr.rel target = $region417
      $region422: #{tpu_custom_call.1} parent=414 // loop_exit
        _
    $region415: #{tpu_custom_call.1} parent=1 // pred_fallthru
      _
    // Predicated region
    $region434: #{tpu_custom_call.1} parent=1 // pred_check
      _
    $region435: #{tpu_custom_call.1} parent=1 // pred_check_branch
      %562 = sbr.rel (0) target = $region437
    $region436: #{tpu_custom_call.1} parent=1 // pred_region
      %563 = vsyncadd %s529, 16
    $region437: #{tpu_custom_call.1} parent=1 // pred_fallthru
      _
    %s564 = sld [smem:[#allocation7 + $0x7]]
    %s565 = scalar_lea.vmem %s2, %s564
    %s566 = scalar_lea.vmem [#allocation2], 7
    %s567 = scalar_lea.sflag [#allocation4], 7
    // Predicated region
    $region438: #{tpu_custom_call.1} parent=1 // pred_check
      _
    $region439: #{tpu_custom_call.1} parent=1 // pred_check_branch
      %569 = sbr.rel target = $region441
    $region440: #{tpu_custom_call.1} parent=1 // pred_region
      // Predicated region
      $region453: #{tpu_custom_call.1} parent=440 // pred_check
        _
      $region454: #{tpu_custom_call.1} parent=440 // pred_check_branch
        %585 = sbr.rel (0) target = $region456
      $region455: #{tpu_custom_call.1} parent=440 // pred_region
        %s587 = ssub.s32 2, 1
        loop: start=0, step=1, limit=1
        $region457: #{tpu_custom_call.1} parent=455 // loop_pre_header
          _
        $region458: #{tpu_custom_call.1} parent=455 // loop_header
          %s589 = sphi 0, %s593
          %p590 = scmp.ge.s32.totalorder %s589, 1
          %s594 = sphi %s565, %s565
          %s595 = sphi %s566, %s566
        $region459: #{tpu_custom_call.1} parent=455 // loop_header_branch
          %592 = sbr.rel (%p590) target = $region463
        $region460: #{tpu_custom_call.1} parent=455 // loop_body
          %v596 = vld [vmem:[%s594] sm:%s587]
          %597 = vst [vmem:[%s595] sm:%s587] %v596
        $region461: #{tpu_custom_call.1} parent=455 // loop_footer
          %s593 = sadd.s32 1, %s589
        $region462: #{tpu_custom_call.1} parent=455 // loop_footer_branch
          %588 = sbr.rel target = $region458
        $region463: #{tpu_custom_call.1} parent=455 // loop_exit
          _
      $region456: #{tpu_custom_call.1} parent=440 // pred_fallthru
        _
    $region441: #{tpu_custom_call.1} parent=1 // pred_fallthru
      _
    // Predicated region
    $region442: #{tpu_custom_call.1} parent=1 // pred_check
      _
    $region443: #{tpu_custom_call.1} parent=1 // pred_check_branch
      %571 = sbr.rel (0) target = $region445
    $region444: #{tpu_custom_call.1} parent=1 // pred_region
      %s573 = ssub.s32 2, 1
      loop: start=0, step=1, limit=1
      $region446: #{tpu_custom_call.1} parent=444 // loop_pre_header
        _
      $region447: #{tpu_custom_call.1} parent=444 // loop_header
        %s575 = sphi 0, %s579
        %p576 = scmp.ge.s32.totalorder %s575, 1
        %s580 = sphi %s565, %s565
        %s581 = sphi %s566, %s566
      $region448: #{tpu_custom_call.1} parent=444 // loop_header_branch
        %578 = sbr.rel (%p576) target = $region452
      $region449: #{tpu_custom_call.1} parent=444 // loop_body
        %v582 = vld [vmem:[%s580] sm:%s573]
        %583 = vst [vmem:[%s581] sm:%s573] %v582
      $region450: #{tpu_custom_call.1} parent=444 // loop_footer
        %s579 = sadd.s32 1, %s575
      $region451: #{tpu_custom_call.1} parent=444 // loop_footer_branch
        %574 = sbr.rel target = $region447
      $region452: #{tpu_custom_call.1} parent=444 // loop_exit
        _
    $region445: #{tpu_custom_call.1} parent=1 // pred_fallthru
      _
    // Predicated region
    $region464: #{tpu_custom_call.1} parent=1 // pred_check
      _
    $region465: #{tpu_custom_call.1} parent=1 // pred_check_branch
      %600 = sbr.rel (0) target = $region467
    $region466: #{tpu_custom_call.1} parent=1 // pred_region
      %601 = vsyncadd %s567, 16
    $region467: #{tpu_custom_call.1} parent=1 // pred_fallthru
      _
    %s602 = sld [smem:[#allocation8 + $0x7]]
    %s603 = scalar_lea.vmem %s3, %s602
    %s604 = scalar_lea.vmem [#allocation3], 7
    %s605 = scalar_lea.sflag [#allocation5], 7
    // Predicated region
    $region468: #{tpu_custom_call.1} parent=1 // pred_check
      _
    $region469: #{tpu_custom_call.1} parent=1 // pred_check_branch
      %607 = sbr.rel target = $region471
    $region470: #{tpu_custom_call.1} parent=1 // pred_region
      // Predicated region
      $region483: #{tpu_custom_call.1} parent=470 // pred_check
        _
      $region484: #{tpu_custom_call.1} parent=470 // pred_check_branch
        %623 = sbr.rel (0) target = $region486
      $region485: #{tpu_custom_call.1} parent=470 // pred_region
        %s625 = ssub.s32 2, 1
        loop: start=0, step=1, limit=1
        $region487: #{tpu_custom_call.1} parent=485 // loop_pre_header
          _
        $region488: #{tpu_custom_call.1} parent=485 // loop_header
          %s627 = sphi 0, %s631
          %p628 = scmp.ge.s32.totalorder %s627, 1
          %s632 = sphi %s603, %s603
          %s633 = sphi %s604, %s604
        $region489: #{tpu_custom_call.1} parent=485 // loop_header_branch
          %630 = sbr.rel (%p628) target = $region493
        $region490: #{tpu_custom_call.1} parent=485 // loop_body
          %v634 = vld [vmem:[%s632] sm:%s625]
          %635 = vst [vmem:[%s633] sm:%s625] %v634
        $region491: #{tpu_custom_call.1} parent=485 // loop_footer
          %s631 = sadd.s32 1, %s627
        $region492: #{tpu_custom_call.1} parent=485 // loop_footer_branch
          %626 = sbr.rel target = $region488
        $region493: #{tpu_custom_call.1} parent=485 // loop_exit
          _
      $region486: #{tpu_custom_call.1} parent=470 // pred_fallthru
        _
    $region471: #{tpu_custom_call.1} parent=1 // pred_fallthru
      _
    // Predicated region
    $region472: #{tpu_custom_call.1} parent=1 // pred_check
      _
    $region473: #{tpu_custom_call.1} parent=1 // pred_check_branch
      %609 = sbr.rel (0) target = $region475
    $region474: #{tpu_custom_call.1} parent=1 // pred_region
      %s611 = ssub.s32 2, 1
      loop: start=0, step=1, limit=1
      $region476: #{tpu_custom_call.1} parent=474 // loop_pre_header
        _
      $region477: #{tpu_custom_call.1} parent=474 // loop_header
        %s613 = sphi 0, %s617
        %p614 = scmp.ge.s32.totalorder %s613, 1
        %s618 = sphi %s603, %s603
        %s619 = sphi %s604, %s604
      $region478: #{tpu_custom_call.1} parent=474 // loop_header_branch
        %616 = sbr.rel (%p614) target = $region482
      $region479: #{tpu_custom_call.1} parent=474 // loop_body
        %v620 = vld [vmem:[%s618] sm:%s611]
        %621 = vst [vmem:[%s619] sm:%s611] %v620
      $region480: #{tpu_custom_call.1} parent=474 // loop_footer
        %s617 = sadd.s32 1, %s613
      $region481: #{tpu_custom_call.1} parent=474 // loop_footer_branch
        %612 = sbr.rel target = $region477
      $region482: #{tpu_custom_call.1} parent=474 // loop_exit
        _
    $region475: #{tpu_custom_call.1} parent=1 // pred_fallthru
      _
    // Predicated region
    $region494: #{tpu_custom_call.1} parent=1 // pred_check
      _
    $region495: #{tpu_custom_call.1} parent=1 // pred_check_branch
      %638 = sbr.rel (0) target = $region497
    $region496: #{tpu_custom_call.1} parent=1 // pred_region
      %639 = vsyncadd %s605, 16
    $region497: #{tpu_custom_call.1} parent=1 // pred_fallthru
      _
    %s640 = smul.u32 1, 1
    %s641 = sshll.u32 %s640, 4
    %642 = dma.done [#allocation4], %s641
    %s643 = sshll.u32 %s640, 4
    %644 = dma.done [#allocation5], %s643
    %s645 = sshll.u32 %s640, 4
    %646 = dma.done %s111, %s645
    %s647 = sshll.u32 %s640, 4
    %648 = dma.done %s149, %s647
    %s649 = sshll.u32 %s640, 4
    %650 = dma.done %s187, %s649
    %s651 = sshll.u32 %s640, 4
    %652 = dma.done %s225, %s651
    %s653 = sshll.u32 %s640, 4
    %654 = dma.done %s263, %s653
    %s655 = sshll.u32 %s640, 4
    %656 = dma.done %s301, %s655
    %s657 = sshll.u32 %s640, 4
    %658 = dma.done %s339, %s657
    %s659 = sshll.u32 %s640, 4
    %660 = dma.done %s377, %s659
    %s661 = sshll.u32 %s640, 4
    %662 = dma.done %s415, %s661
    %s663 = sshll.u32 %s640, 4
    %664 = dma.done %s453, %s663
    %s665 = sshll.u32 %s640, 4
    %666 = dma.done %s491, %s665
    %s667 = sshll.u32 %s640, 4
    %668 = dma.done %s529, %s667
    %s669 = sshll.u32 %s640, 4
    %670 = dma.done %s567, %s669
    %s671 = sshll.u32 %s640, 4
    %672 = dma.done %s605, %s671
    %v673 = vld [vmem:[#allocation2] sm:$0xff]
    %v674 = vld [vmem:[#allocation3] sm:$0xff]
    %v675 = vpack.c.bf16 %v673, %v673
    %v676 = vld [vmem:[%s4] sm:$0xf]
    %v677 = vld [vmem:[%s4 + $0x4] sm:$0xf]
    %v678 = vpack.c.bf16 %v674, %v674
    %v679 = vld [vmem:[%s4 + $0x8] sm:$0xf]
    %v680 = vld [vmem:[%s4 + $0xc] sm:$0xf]
    %v683 = vunpack.c.l.b16 %v679
    %v684 = vunpack.c.l.b16 %v680
    %v685 = vpack.c.b16 %v684, %v683
    %vm687 = vcmask 130048
    %v689 = vsel %vm687, %v678, 0
    %691 = vmatpush.bf16.msra.mxu0 0
    %692 = vmatpush.bf16.msra.mxu0 0
    %693 = vmatpush.bf16.msra.mxu0 0
    %694 = vmatpush.bf16.msra.mxu0 0
    %695 = vmatpush.bf16.msra.mxu0 0
    %696 = vmatpush.bf16.msra.mxu0 0
    %697 = vmatpush.bf16.msra.mxu0 0
    %698 = vmatpush.bf16.msra.mxu0 %v685
    %699 = vmatmul.bf16.gmra.mxu0 %v689
    %v700 = vpop.f32.mrf.mxu0
    %v701 = vadd.f32 0.0, %v700
    %v702 = vpop.f32.mrf.mxu0
    %703 = vdwg.mxu0
    %v706 = vunpack.c.l.b16 %v676
    %v707 = vunpack.c.l.b16 %v677
    %v708 = vpack.c.b16 %v707, %v706
    %v711 = vsel %vm687, %v675, 0
    %713 = vmatpush.bf16.msra.mxu0 0
    %714 = vmatpush.bf16.msra.mxu0 0
    %715 = vmatpush.bf16.msra.mxu0 0
    %716 = vmatpush.bf16.msra.mxu0 0
    %717 = vmatpush.bf16.msra.mxu0 0
    %718 = vmatpush.bf16.msra.mxu0 0
    %719 = vmatpush.bf16.msra.mxu0 0
    %720 = vmatpush.bf16.msra.mxu0 %v708
    %721 = vmatmul.bf16.gmra.mxu0 %v711
    %v722 = vpop.f32.mrf.mxu0
    %v723 = vadd.f32 %v701, %v722
    %v724 = vpop.f32.mrf.mxu0
    %725 = vdwg.mxu0
    %v726 = vld [vmem:[%s7] sm:$0x1]
    %v727 = vld [vmem:[%s7 + $0x1] sm:$0x1]
    %vm728 = vcmask 523264
    %v729 = vsel %vm728, %v723, 0.0
    %v730 = vrot.slane %v729, 4
    %v731 = vadd.f32 %v729, %v730
    %v732 = vrot.slane %v731, 2
    %v733 = vadd.f32 %v731, %v732
    %v734 = vrot.slane %v733, 1
    %v735 = vadd.f32 %v733, %v734
    %v736 = vrcp.pop 8.0
    %v737 = vmul.f32 8.0, %v736
    %v738 = vsub.f32 1.0, %v737
    %v739 = vmul.f32 %v736, %v738
    %v740 = vadd.f32 %v736, %v739
    %vm741 = vweird.f32 %v736
    %v742 = vsel %vm741, %v736, %v740
    %v743 = vmul.f32 %v735, %v742
    %v744 = vsub.f32 %v723, %v743
    %v745 = vmul.f32 %v744, %v744
    %v746 = vsel %vm728, %v745, 0.0
    %v747 = vrot.slane %v746, 4
    %v748 = vadd.f32 %v746, %v747
    %v749 = vrot.slane %v748, 2
    %v750 = vadd.f32 %v748, %v749
    %v751 = vrot.slane %v750, 1
    %v752 = vadd.f32 %v750, %v751
    %v753 = vmul.f32 %v752, %v742
    %v754 = vadd.f32 %v753, 1e-05
    %v755 = vrsqrt.pop %v754
    %v756 = vmul.f32 %v755, %v754
    %v757 = vmul.f32 %v756, %v755
    %v758 = vmul.f32 0.5, %v757
    %v759 = vsub.f32 1.5, %v758
    %v760 = vmul.f32 %v755, %v759
    %vm761 = vweird.f32 %v754
    %vm762 = vweird.f32 %v755
    %vm763 = vmor %vm761, %vm762
    %v764 = vsel %vm763, %v755, %v760
    %v765 = vmul.f32 %v726, %v764
    %v766 = vmul.f32 %v743, %v765
    %v767 = vsub.f32 %v727, %v766
    %v768 = vperm.slane %v765, 0
    %v769 = vmul.f32 %v723, %v768
    %v770 = vperm.slane %v767, 0
    %v771 = vadd.f32 %v769, %v770
    %v772 = vmax.f32 %v771, 0.0
    %v773 = vpack.c.bf16 %v772, %v772
    %v774 = vld [vmem:[%s5] sm:$0xf]
    %v775 = vld [vmem:[%s5 + $0x4] sm:$0xf]
    %v776 = vld [vmem:[%s5 + $0x8] sm:$0xf]
    %v777 = vld [vmem:[%s5 + $0xc] sm:$0xf]
    %v778 = vld [vmem:[%s5 + $0x10] sm:$0xf]
    %v779 = vld [vmem:[%s5 + $0x14] sm:$0xf]
    %v780 = vld [vmem:[%s5 + $0x18] sm:$0xf]
    %v781 = vld [vmem:[%s5 + $0x1c] sm:$0xf]
    %v790 = vunpack.c.l.b16 %v774
    %v791 = vunpack.c.l.b16 %v775
    %v792 = vunpack.c.l.b16 %v776
    %v793 = vunpack.c.l.b16 %v777
    %v794 = vunpack.c.l.b16 %v778
    %v795 = vunpack.c.l.b16 %v779
    %v796 = vunpack.c.l.b16 %v780
    %v797 = vunpack.c.l.b16 %v781
    %v798 = vpack.c.b16 %v791, %v790
    %v799 = vpack.c.b16 %v793, %v792
    %v800 = vpack.c.b16 %v795, %v794
    %v801 = vpack.c.b16 %v797, %v796
    %v807 = vsel %vm728, %v773, 0
    %809 = vmatpush.bf16.msra.mxu0 0
    %810 = vmatpush.bf16.msra.mxu0 0
    %811 = vmatpush.bf16.msra.mxu0 0
    %812 = vmatpush.bf16.msra.mxu0 0
    %813 = vmatpush.bf16.msra.mxu0 %v801
    %814 = vmatpush.bf16.msra.mxu0 %v800
    %815 = vmatpush.bf16.msra.mxu0 %v799
    %816 = vmatpush.bf16.msra.mxu0 %v798
    %817 = vmatmul.bf16.gmra.mxu0 %v807
    %v818 = vpop.f32.mrf.mxu0
    %v819 = vadd.f32 0.0, %v818
    %v820 = vpop.f32.mrf.mxu0
    %821 = vdwg.mxu0
    %v822 = vld [vmem:[%s7 + $0x2] sm:$0x1]
    %v823 = vld [vmem:[%s7 + $0x3] sm:$0x1]
    %vm824 = vcmask 261120
    %v825 = vsel %vm824, %v819, 0.0
    %v826 = vrot.slane %v825, 4
    %v827 = vadd.f32 %v825, %v826
    %v828 = vrot.slane %v827, 2
    %v829 = vadd.f32 %v827, %v828
    %v830 = vrot.slane %v829, 1
    %v831 = vadd.f32 %v829, %v830
    %v832 = vmul.f32 %v831, %v742
    %v833 = vsub.f32 %v819, %v832
    %v834 = vmul.f32 %v833, %v833
    %v835 = vsel %vm824, %v834, 0.0
    %v836 = vrot.slane %v835, 4
    %v837 = vadd.f32 %v835, %v836
    %v838 = vrot.slane %v837, 2
    %v839 = vadd.f32 %v837, %v838
    %v840 = vrot.slane %v839, 1
    %v841 = vadd.f32 %v839, %v840
    %v842 = vmul.f32 %v841, %v742
    %v843 = vadd.f32 %v842, 1e-05
    %v844 = vrsqrt.pop %v843
    %v845 = vmul.f32 %v844, %v843
    %v846 = vmul.f32 %v845, %v844
    %v847 = vmul.f32 0.5, %v846
    %v848 = vsub.f32 1.5, %v847
    %v849 = vmul.f32 %v844, %v848
    %vm850 = vweird.f32 %v843
    %vm851 = vweird.f32 %v844
    %vm852 = vmor %vm850, %vm851
    %v853 = vsel %vm852, %v844, %v849
    %v854 = vmul.f32 %v822, %v853
    %v855 = vmul.f32 %v832, %v854
    %v856 = vsub.f32 %v823, %v855
    %v857 = vperm.slane %v854, 0
    %v858 = vmul.f32 %v819, %v857
    %v859 = vperm.slane %v856, 0
    %v860 = vadd.f32 %v858, %v859
    %v861 = vmax.f32 %v860, 0.0
    %v862 = vpack.c.bf16 %v861, %v861
    %v863 = vld [vmem:[%s6] sm:$0xf]
    %v864 = vld [vmem:[%s6 + $0x4] sm:$0xf]
    %v865 = vld [vmem:[%s6 + $0x8] sm:$0xf]
    %v866 = vld [vmem:[%s6 + $0xc] sm:$0xf]
    %v871 = vunpack.c.l.b16 %v863
    %v872 = vunpack.c.l.b16 %v864
    %v873 = vunpack.c.l.b16 %v865
    %v874 = vunpack.c.l.b16 %v866
    %v875 = vpack.c.b16 %v872, %v871
    %v876 = vpack.c.b16 %v874, %v873
    %v880 = vsel %vm824, %v862, 0
    %882 = vmatpush.bf16.msra.mxu0 0
    %883 = vmatpush.bf16.msra.mxu0 0
    %884 = vmatpush.bf16.msra.mxu0 0
    %885 = vmatpush.bf16.msra.mxu0 0
    %886 = vmatpush.bf16.msra.mxu0 0
    %887 = vmatpush.bf16.msra.mxu0 0
    %888 = vmatpush.bf16.msra.mxu0 %v876
    %889 = vmatpush.bf16.msra.mxu0 %v875
    %890 = vmatmul.bf16.gmra.mxu0 %v880
    %v891 = vpop.f32.mrf.mxu0
    %v892 = vadd.f32 0.0, %v891
    %v893 = vpop.f32.mrf.mxu0
    %894 = vdwg.mxu0
    %v895 = vld [vmem:[%s7 + $0x4] sm:$0x1]
    %v896 = vld [vmem:[%s7 + $0x5] sm:$0x1]
    %v897 = vsel %vm687, %v892, 0.0
    %v898 = vrot.slane %v897, 4
    %v899 = vadd.f32 %v897, %v898
    %v900 = vrot.slane %v899, 2
    %v901 = vadd.f32 %v899, %v900
    %v902 = vrot.slane %v901, 1
    %v903 = vadd.f32 %v901, %v902
    %v904 = vmul.f32 %v903, %v742
    %v905 = vsub.f32 %v892, %v904
    %v906 = vmul.f32 %v905, %v905
    %v907 = vsel %vm687, %v906, 0.0
    %v908 = vrot.slane %v907, 4
    %v909 = vadd.f32 %v907, %v908
    %v910 = vrot.slane %v909, 2
    %v911 = vadd.f32 %v909, %v910
    %v912 = vrot.slane %v911, 1
    %v913 = vadd.f32 %v911, %v912
    %v914 = vmul.f32 %v913, %v742
    %v915 = vadd.f32 %v914, 1e-05
    %v916 = vrsqrt.pop %v915
    %v917 = vmul.f32 %v916, %v915
    %v918 = vmul.f32 %v917, %v916
    %v919 = vmul.f32 0.5, %v918
    %v920 = vsub.f32 1.5, %v919
    %v921 = vmul.f32 %v916, %v920
    %vm922 = vweird.f32 %v915
    %vm923 = vweird.f32 %v916
    %vm924 = vmor %vm922, %vm923
    %v925 = vsel %vm924, %v916, %v921
    %v926 = vmul.f32 %v895, %v925
    %v927 = vmul.f32 %v904, %v926
    %v928 = vsub.f32 %v896, %v927
    %v929 = vperm.slane %v926, 0
    %v930 = vmul.f32 %v892, %v929
    %v931 = vperm.slane %v928, 0
    %v932 = vadd.f32 %v930, %v931
    %v933 = vmax.f32 %v932, 0.0
    %934 = vst.msk [vmem:[#allocation9] sm:$0xff] %vm687, %v933
    // Predicated region
    $region498: #{tpu_custom_call.1} parent=1 // pred_check
      _
    $region499: #{tpu_custom_call.1} parent=1 // pred_check_branch
      %936 = sbr.rel (0) target = $region501
    $region500: #{tpu_custom_call.1} parent=1 // pred_region
      %938 = vsyncadd [#allocation10], 0
      %s940 = sshll.u32 [#allocation9], 4
      %s941 = int_to_ptr.vmem [resolvable:$true] %s940
      %s942 = sshll.u32 %s8, 4
      %s943 = int_to_ptr.hbm [resolvable:$true] %s942
      %945 = dma.vmem_to_hbm [thread:$0]  %s941, 128, %s943, [#allocation10]
    $region501: #{tpu_custom_call.1} parent=1 // pred_fallthru
      _
    // Predicated region
    $region502: #{tpu_custom_call.1} parent=1 // pred_check
      _
    $region503: #{tpu_custom_call.1} parent=1 // pred_check_branch
      %947 = sbr.rel (0) target = $region505
    $region504: #{tpu_custom_call.1} parent=1 // pred_region
      %949 = dma.done [#allocation10], 128
    $region505: #{tpu_custom_call.1} parent=1 // pred_fallthru
      _
    %950 = vsyncpa [#allocation10], 1
  %951 = vsyncmov [#allocation4]
  %s952 = vpop.sfrf %951
  %p953 = scmp.eq.s32.totalorder %s952, 0
  %p954 = pneg %p953
  %956 = shalt.err (%p954)
  %s957 = scalar_lea.sflag [#allocation4], 1
  %958 = vsyncmov %s957
  %s959 = vpop.sfrf %958
  %p960 = scmp.eq.s32.totalorder %s959, 0
  %p961 = pneg %p960
  %963 = shalt.err (%p961)
  %s964 = scalar_lea.sflag [#allocation4], 2
  %965 = vsyncmov %s964
  %s966 = vpop.sfrf %965
  %p967 = scmp.eq.s32.totalorder %s966, 0
  %p968 = pneg %p967
  %970 = shalt.err (%p968)
  %s971 = scalar_lea.sflag [#allocation4], 3
  %972 = vsyncmov %s971
  %s973 = vpop.sfrf %972
  %p974 = scmp.eq.s32.totalorder %s973, 0
  %p975 = pneg %p974
  %977 = shalt.err (%p975)
  %s978 = scalar_lea.sflag [#allocation4], 4
  %979 = vsyncmov %s978
  %s980 = vpop.sfrf %979
  %p981 = scmp.eq.s32.totalorder %s980, 0
  %p982 = pneg %p981
  %984 = shalt.err (%p982)
  %s985 = scalar_lea.sflag [#allocation4], 5
  %986 = vsyncmov %s985
  %s987 = vpop.sfrf %986
  %p988 = scmp.eq.s32.totalorder %s987, 0
  %p989 = pneg %p988
  %991 = shalt.err (%p989)
  %s992 = scalar_lea.sflag [#allocation4], 6
  %993 = vsyncmov %s992
  %s994 = vpop.sfrf %993
  %p995 = scmp.eq.s32.totalorder %s994, 0
  %p996 = pneg %p995
  %998 = shalt.err (%p996)
  %s999 = scalar_lea.sflag [#allocation4], 7
  %1000 = vsyncmov %s999
  %s1001 = vpop.sfrf %1000
  %p1002 = scmp.eq.s32.totalorder %s1001, 0
  %p1003 = pneg %p1002
  %1005 = shalt.err (%p1003)
  %1006 = vsyncmov [#allocation5]
  %s1007 = vpop.sfrf %1006
  %p1008 = scmp.eq.s32.totalorder %s1007, 0
  %p1009 = pneg %p1008
  %1011 = shalt.err (%p1009)
  %s1012 = scalar_lea.sflag [#allocation5], 1
  %1013 = vsyncmov %s1012
  %s1014 = vpop.sfrf %1013
  %p1015 = scmp.eq.s32.totalorder %s1014, 0
  %p1016 = pneg %p1015
  %1018 = shalt.err (%p1016)
  %s1019 = scalar_lea.sflag [#allocation5], 2
  %1020 = vsyncmov %s1019
  %s1021 = vpop.sfrf %1020
  %p1022 = scmp.eq.s32.totalorder %s1021, 0
  %p1023 = pneg %p1022
  %1025 = shalt.err (%p1023)
  %s1026 = scalar_lea.sflag [#allocation5], 3
  %1027 = vsyncmov %s1026
  %s1028 = vpop.sfrf %1027
  %p1029 = scmp.eq.s32.totalorder %s1028, 0
  %p1030 = pneg %p1029
  %1032 = shalt.err (%p1030)
  %s1033 = scalar_lea.sflag [#allocation5], 4
  %1034 = vsyncmov %s1033
  %s1035 = vpop.sfrf %1034
  %p1036 = scmp.eq.s32.totalorder %s1035, 0
  %p1037 = pneg %p1036
  %1039 = shalt.err (%p1037)
  %s1040 = scalar_lea.sflag [#allocation5], 5
  %1041 = vsyncmov %s1040
  %s1042 = vpop.sfrf %1041
  %p1043 = scmp.eq.s32.totalorder %s1042, 0
  %p1044 = pneg %p1043
  %1046 = shalt.err (%p1044)
  %s1047 = scalar_lea.sflag [#allocation5], 6
  %1048 = vsyncmov %s1047
  %s1049 = vpop.sfrf %1048
  %p1050 = scmp.eq.s32.totalorder %s1049, 0
  %p1051 = pneg %p1050
  %1053 = shalt.err (%p1051)
  %s1054 = scalar_lea.sflag [#allocation5], 7
  %1055 = vsyncmov %s1054
  %s1056 = vpop.sfrf %1055
  %p1057 = scmp.eq.s32.totalorder %s1056, 0
  %p1058 = pneg %p1057
  %1060 = shalt.err (%p1058)

</llo_original>
